<compile_context>
chip_gen: v6e
topology: v6e:2x2x1
jax: 0.10.0
libtpu: 0.0.40
codegen_flags: <defaults>
</compile_context>

<pallas_src>
from functools import partial

import jax
import jax.numpy as jnp
from jax.experimental import pallas as pl
from jax.experimental.pallas import tpu as pltpu


_NEG_INF = -1e30   # large finite fill (safe for f32 score math)


def _ceil_to(x, m):
    return ((x + m - 1) // m) * m


# ---------------------------------------------------------------------------
# Kernel 1: fused LayerNorm (+optional "stable" pre-divide) -> matmul (+bias)
#           (+optional fused relu^2).  Grid = (M tiles, N tiles); K kept whole
#           so the LN row statistics are exact.
# ---------------------------------------------------------------------------

def _ln_matmul_kernel(x_ref, g_ref, b_ref, w_ref, *rest,
                      stable, activation, has_bias, eps=1e-5):
    if has_bias:
        bias_ref, o_ref = rest
    else:
        (o_ref,) = rest

    x = x_ref[...].astype(jnp.float32)                       # (tm, K)
    if stable:
        # triton-transformer "stable" layernorm: divide by the row max first
        x = x / jnp.max(x, axis=-1, keepdims=True)
    mean = jnp.mean(x, axis=-1, keepdims=True)
    xc = x - mean
    var = jnp.mean(jnp.square(xc), axis=-1, keepdims=True)
    xn = xc * jax.lax.rsqrt(var + eps)
    xn = xn * g_ref[...].astype(jnp.float32) + b_ref[...].astype(jnp.float32)

    acc = jnp.dot(xn.astype(jnp.bfloat16), w_ref[...].astype(jnp.bfloat16),
                  preferred_element_type=jnp.float32)        # (tm, tn), MXU bf16
    if has_bias:
        acc = acc + bias_ref[...].astype(jnp.float32)
    if activation == "relu_sq":                              # fused_relu_squared
        acc = jnp.square(jnp.maximum(acc, 0.0))
    o_ref[...] = acc.astype(o_ref.dtype)


def pallas_ln_matmul(x, gamma, beta, w, bias=None, *, stable=False,
                     activation=None, tm=256, tn=256):
    """LayerNorm(x) @ w (+ bias) with LN fused into the matmul kernel."""
    M, K = x.shape
    Kw, N = w.shape
    assert K == Kw

    if M > tm:
        Mp = _ceil_to(M, tm)
        x = jnp.pad(x, ((0, Mp - M), (0, 0)))
    else:
        tm, Mp = M, M
    if N > tn:
        Np = _ceil_to(N, tn)
        w = jnp.pad(w, ((0, 0), (0, Np - N)))
        if bias is not None:
            bias = jnp.pad(bias, (0, Np - N))
    else:
        tn, Np = N, N

    has_bias = bias is not None
    in_specs = [
        pl.BlockSpec((tm, K), lambda i, j: (i, 0)),
        pl.BlockSpec((1, K), lambda i, j: (0, 0)),
        pl.BlockSpec((1, K), lambda i, j: (0, 0)),
        pl.BlockSpec((K, tn), lambda i, j: (0, j)),
    ]
    args = [x, gamma.reshape(1, K), beta.reshape(1, K), w]
    if has_bias:
        in_specs.append(pl.BlockSpec((1, tn), lambda i, j: (0, j)))
        args.append(bias.reshape(1, Np))

    out = pl.pallas_call(
        partial(_ln_matmul_kernel, stable=stable, activation=activation,
                has_bias=has_bias),
        out_shape=jax.ShapeDtypeStruct((Mp, Np), x.dtype),
        grid=(Mp // tm, Np // tn),
        in_specs=in_specs,
        out_specs=pl.BlockSpec((tm, tn), lambda i, j: (i, j)),
        compiler_params=pltpu.CompilerParams(
            dimension_semantics=("parallel", "parallel")),
    )(*args)
    if (Mp, Np) != (M, N):
        out = out[:M, :N]
    return out


# ---------------------------------------------------------------------------
# Kernel 2: tiled accumulator matmul (+bias, +optional relu^2)
#           Grid = (M tiles, N tiles, K tiles) with K innermost ("arbitrary"),
#           f32 VMEM scratch accumulator, bf16 MXU operands.
# ---------------------------------------------------------------------------

def _matmul_kernel(x_ref, w_ref, *rest, activation, has_bias):
    if has_bias:
        b_ref, o_ref, acc_ref = rest
    else:
        o_ref, acc_ref = rest

    @pl.when(pl.program_id(2) == 0)
    def _():
        acc_ref[...] = jnp.zeros_like(acc_ref)

    acc_ref[...] += jnp.dot(x_ref[...].astype(jnp.bfloat16),
                            w_ref[...].astype(jnp.bfloat16),
                            preferred_element_type=jnp.float32)

    @pl.when(pl.program_id(2) == pl.num_programs(2) - 1)
    def _():
        acc = acc_ref[...]
        if has_bias:
            acc = acc + b_ref[...].astype(jnp.float32)
        if activation == "relu_sq":
            acc = jnp.square(jnp.maximum(acc, 0.0))
        o_ref[...] = acc.astype(o_ref.dtype)


def pallas_matmul(x, w, bias=None, *, activation=None, tm=256, tn=256, tk=512):
    M, K = x.shape
    Kw, N = w.shape
    assert K == Kw

    if M > tm:
        Mp = _ceil_to(M, tm)
        x = jnp.pad(x, ((0, Mp - M), (0, 0)))
    else:
        tm, Mp = M, M
    if K > tk:
        Kp = _ceil_to(K, tk)
        x = jnp.pad(x, ((0, 0), (0, Kp - K)))
        w = jnp.pad(w, ((0, Kp - K), (0, 0)))
    else:
        tk, Kp = K, K
    if N > tn:
        Np = _ceil_to(N, tn)
        w = jnp.pad(w, ((0, 0), (0, Np - N)))
        if bias is not None:
            bias = jnp.pad(bias, (0, Np - N))
    else:
        tn, Np = N, N

    has_bias = bias is not None
    in_specs = [
        pl.BlockSpec((tm, tk), lambda i, j, k: (i, k)),
        pl.BlockSpec((tk, tn), lambda i, j, k: (k, j)),
    ]
    args = [x, w]
    if has_bias:
        in_specs.append(pl.BlockSpec((1, tn), lambda i, j, k: (0, j)))
        args.append(bias.reshape(1, Np))

    out = pl.pallas_call(
        partial(_matmul_kernel, activation=activation, has_bias=has_bias),
        out_shape=jax.ShapeDtypeStruct((Mp, Np), x.dtype),
        grid=(Mp // tm, Np // tn, Kp // tk),
        in_specs=in_specs,
        out_specs=pl.BlockSpec((tm, tn), lambda i, j, k: (i, j)),
        scratch_shapes=[pltpu.VMEM((tm, tn), jnp.float32)],
        compiler_params=pltpu.CompilerParams(
            dimension_semantics=("parallel", "parallel", "arbitrary")),
    )(*args)
    if (Mp, Np) != (M, N):
        out = out[:M, :N]
    return out


# ---------------------------------------------------------------------------
# Kernel 3: flash-style attention
#           Grid = (B*H, q tiles, kv tiles) with kv innermost ("arbitrary"),
#           online softmax with f32 running max / sum / accumulator in VMEM,
#           causal key blocks entirely in the future are skipped via pl.when.
# ---------------------------------------------------------------------------

def _flash_attn_kernel(q_ref, k_ref, v_ref, o_ref, m_sc, l_sc, acc_sc,
                       *, causal, scale, tq, tk, n_valid, n_padded):
    qi = pl.program_id(1)
    ki = pl.program_id(2)

    @pl.when(ki == 0)
    def _init():
        m_sc[...] = jnp.full_like(m_sc, -jnp.inf)
        l_sc[...] = jnp.zeros_like(l_sc)
        acc_sc[...] = jnp.zeros_like(acc_sc)

    need_kv_mask = (not causal) and (n_padded > n_valid)

    def compute_block():
        q = (q_ref[0].astype(jnp.float32) * scale).astype(jnp.bfloat16)   # (tq, Dh)
        k = k_ref[0].astype(jnp.bfloat16)                                  # (tk, Dh)
        s = jax.lax.dot_general(q, k, (((1,), (1,)), ((), ())),
                                preferred_element_type=jnp.float32)        # (tq, tk)
        if causal or need_kv_mask:
            col = ki * tk + jax.lax.broadcasted_iota(jnp.int32, (tq, tk), 1)
        if causal:
            row = qi * tq + jax.lax.broadcasted_iota(jnp.int32, (tq, tk), 0)
            s = jnp.where(col > row, _NEG_INF, s)
        if need_kv_mask:                   # mask zero-padded key positions
            s = jnp.where(col >= n_valid, _NEG_INF, s)

        m_prev = m_sc[...]
        m_new = jnp.maximum(m_prev, jnp.max(s, axis=-1, keepdims=True))
        alpha = jnp.exp(m_prev - m_new)
        p = jnp.exp(s - m_new)
        l_sc[...] = alpha * l_sc[...] + jnp.sum(p, axis=-1, keepdims=True)
        acc_sc[...] = alpha * acc_sc[...] + jnp.dot(
            p.astype(jnp.bfloat16), v_ref[0].astype(jnp.bfloat16),
            preferred_element_type=jnp.float32)
        m_sc[...] = m_new

    if causal:
        # skip key/value tiles that are entirely in the future of this q tile
        pl.when(ki * tk <= qi * tq + (tq - 1))(compute_block)
    else:
        compute_block()

    @pl.when(ki == pl.num_programs(2) - 1)
    def _finalize():
        out = acc_sc[...] * pl.reciprocal(l_sc[...], approx=True)
        o_ref[...] = out[None].astype(o_ref.dtype)


def pallas_flash_attention(q, k, v, *, causal, scale, block=128):
    """q, k, v: [B*H, N, Dh] -> [B*H, N, Dh]."""
    BH, N, Dh = q.shape
    if N <= block:
        tq = tk = N
        Np = N
    else:
        tq = tk = block
        Np = _ceil_to(N, block)
        if Np != N:
            pad = ((0, 0), (0, Np - N), (0, 0))
            q = jnp.pad(q, pad)
            k = jnp.pad(k, pad)
            v = jnp.pad(v, pad)

    spec_q = pl.BlockSpec((1, tq, Dh), lambda b, i, j: (b, i, 0))
    spec_kv = pl.BlockSpec((1, tk, Dh), lambda b, i, j: (b, j, 0))

    out = pl.pallas_call(
        partial(_flash_attn_kernel, causal=causal, scale=scale,
                tq=tq, tk=tk, n_valid=N, n_padded=Np),
        out_shape=jax.ShapeDtypeStruct((BH, Np, Dh), q.dtype),
        grid=(BH, Np // tq, Np // tk),
        in_specs=[spec_q, spec_kv, spec_kv],
        out_specs=spec_q,
        scratch_shapes=[
            pltpu.VMEM((tq, 1), jnp.float32),    # running max
            pltpu.VMEM((tq, 1), jnp.float32),    # running sum
            pltpu.VMEM((tq, Dh), jnp.float32),   # output accumulator
        ],
        compiler_params=pltpu.CompilerParams(
            dimension_semantics=("parallel", "parallel", "arbitrary")),
    )(q, k, v)
    if Np != N:
        out = out[:, :N, :]
    return out


# ---------------------------------------------------------------------------
# Parameter initialization (deterministic, synthetic)
# ---------------------------------------------------------------------------

def init_params(key, *, dim, num_tokens, max_seq_len, depth, heads, dim_head, ff_mult):
    inner = heads * dim_head
    ff_inner = dim * ff_mult

    def nxt():
        nonlocal key
        key, sub = jax.random.split(key)
        return sub

    def rnd(shape, s=0.02):
        return (s * jax.random.normal(nxt(), shape)).astype(jnp.float32)

    params = {
        "token_emb": rnd((num_tokens, dim)),
        "pos_emb": rnd((max_seq_len, dim)),
        "final_g": jnp.ones((dim,), jnp.float32),
        "final_b": jnp.zeros((dim,), jnp.float32),
        # to_logits (nn.Linear(dim, num_tokens)) stored pre-transposed: [dim, num_tokens]
        "w_logits": rnd((dim, num_tokens)),
        "b_logits": rnd((num_tokens,)),
        "layers": [],
    }
    for _ in range(depth):
        layer = {
            "attn_norm_g": jnp.ones((dim,), jnp.float32),
            "attn_norm_b": jnp.zeros((dim,), jnp.float32),
            # to_qkv (bias=False) pre-transposed: [dim, 3*inner]
            "w_qkv": rnd((dim, 3 * inner)),
            # to_out pre-transposed: [inner, dim]
            "w_attn_out": rnd((inner, dim)),
            "b_attn_out": rnd((dim,)),
            "ff_norm_g": jnp.ones((dim,), jnp.float32),
            "ff_norm_b": jnp.zeros((dim,), jnp.float32),
            # proj_in_weight already [dim, inner_dim] in the torch module
            "w_ff_in": rnd((dim, ff_inner)),
            "b_ff_in": rnd((ff_inner,)),
            # proj_out (nn.Linear(ff_inner, dim)) pre-transposed: [ff_inner, dim]
            "w_ff_out": rnd((ff_inner, dim)),
            "b_ff_out": rnd((dim,)),
        }
        params["layers"].append(layer)
    return params


# ---------------------------------------------------------------------------
# Forward pass
# ---------------------------------------------------------------------------

def transformer_forward(tokens, params, *, causal, heads, dim_head):
    B, N = tokens.shape
    D = params["token_emb"].shape[-1]
    inner = heads * dim_head
    scale = dim_head ** -0.5

    # embeddings (gather = glue)
    x = params["token_emb"][tokens] + params["pos_emb"][:N][None, :, :]   # (B, N, D)

    for layer in params["layers"]:
        # --- PreNormResidual(Attention): LN fused into the QKV projection ---
        x2 = x.reshape(B * N, D)
        qkv = pallas_ln_matmul(x2, layer["attn_norm_g"], layer["attn_norm_b"],
                               layer["w_qkv"])                           # (B*N, 3*inner), no bias
        # single reshape/transpose to per-head layout (glue)
        qkv = (qkv.reshape(B, N, 3, heads, dim_head)
                   .transpose(2, 0, 3, 1, 4)
                   .reshape(3, B * heads, N, dim_head))
        attn = pallas_flash_attention(qkv[0], qkv[1], qkv[2],
                                      causal=causal, scale=scale)        # (B*H, N, Dh)
        attn = (attn.reshape(B, heads, N, dim_head)
                    .transpose(0, 2, 1, 3)
                    .reshape(B * N, inner))
        attn = pallas_matmul(attn, layer["w_attn_out"], layer["b_attn_out"])
        x = x + attn.reshape(B, N, D)                                    # residual

        # --- PreNormResidual(FeedForward): LN + relu^2 fused into proj_in ---
        x2 = x.reshape(B * N, D)
        h = pallas_ln_matmul(x2, layer["ff_norm_g"], layer["ff_norm_b"],
                             layer["w_ff_in"], layer["b_ff_in"],
                             activation="relu_sq")                       # relu(.)^2
        ff = pallas_matmul(h, layer["w_ff_out"], layer["b_ff_out"])
        x = x + ff.reshape(B, N, D)                                      # residual

    # final stable layernorm fused into the logits projection (vocab tiled over N axis)
    x2 = x.reshape(B * N, D)
    logits = pallas_ln_matmul(x2, params["final_g"], params["final_b"],
                              params["w_logits"], params["b_logits"],
                              stable=True)
    return logits.reshape(B, N, -1)
    # TODO(synk): cross_entropy_fn(labels) path not implemented (labels=None returns logits)
    # TODO(synk): non-causal padding `mask` and dropout (inference -> identity) not implemented


# ---------------------------------------------------------------------------
# Demo
# ---------------------------------------------------------------------------

if __name__ == "__main__":
    # small config consistent with the module
    dim = 32
    num_tokens = 64
    max_seq_len = 16
    depth = 2
    heads = 2
    dim_head = 16
    ff_mult = 4
    causal = True

    batch = 2
    seq = 8

    key = jax.random.PRNGKey(0)
    pkey, tkey = jax.random.split(key)
    params = init_params(pkey, dim=dim, num_tokens=num_tokens,
                         max_seq_len=max_seq_len, depth=depth, heads=heads,
                         dim_head=dim_head, ff_mult=ff_mult)

    tokens = jax.random.randint(tkey, (batch, seq), 0, num_tokens, dtype=jnp.int32)

    fwd = jax.jit(partial(transformer_forward, causal=causal,
                          heads=heads, dim_head=dim_head))
    logits = fwd(tokens, params)
    logits = jax.block_until_ready(logits)
    assert logits.shape == (batch, seq, num_tokens)
    assert bool(jnp.all(jnp.isfinite(logits)))
    print("KERNEL_OK")
</pallas_src>

<mosaic_0001>
module attributes {stable_mosaic.version = 11 : i64} {
  func.func @_ln_matmul_kernel(%arg0: i32, %arg1: i32, %arg2: memref<16x32xf32, #tpu.memory_space<vmem>>, %arg3: memref<1x32xf32, #tpu.memory_space<vmem>>, %arg4: memref<1x32xf32, #tpu.memory_space<vmem>>, %arg5: memref<32x96xf32, #tpu.memory_space<vmem>>, %arg6: memref<16x96xf32, #tpu.memory_space<vmem>>) attributes {dimension_semantics = [#tpu.dimension_semantics<parallel>, #tpu.dimension_semantics<parallel>], iteration_bounds = array<i64: 1, 1>, scalar_prefetch = 0 : i64, scratch_operands = 0 : i64, tpu.core_type = #tpu.core_type<tc>, window_params = [{transform_indices = @transform_0, window_bounds = array<i64: 16, 32>}, {pipeline_mode = #tpu.pipeline_mode<synchronous>, transform_indices = @transform_1, window_bounds = array<i64: 1, 32>}, {pipeline_mode = #tpu.pipeline_mode<synchronous>, transform_indices = @transform_2, window_bounds = array<i64: 1, 32>}, {transform_indices = @transform_3, window_bounds = array<i64: 32, 96>}, {transform_indices = @transform_4, window_bounds = array<i64: 16, 96>}]} {
    %c0 = arith.constant 0 : index
    %c0_0 = arith.constant 0 : index
    %0 = vector.load %arg2[%c0, %c0_0] : memref<16x32xf32, #tpu.memory_space<vmem>>, vector<16x32xf32>
    %cst = arith.constant dense<0.000000e+00> : vector<16xf32>
    %1 = vector.multi_reduction <add>, %0, %cst [1] : vector<16x32xf32> to vector<16xf32>
    %2 = vector.shape_cast %1 : vector<16xf32> to vector<16x1xf32>
    %cst_1 = arith.constant 3.200000e+01 : f32
    %3 = vector.broadcast %cst_1 : f32 to vector<16x1xf32>
    %4 = arith.divf %2, %3 : vector<16x1xf32>
    %5 = vector.broadcast %4 : vector<16x1xf32> to vector<16x32xf32>
    %6 = arith.subf %0, %5 : vector<16x32xf32>
    %7 = arith.mulf %6, %6 : vector<16x32xf32>
    %cst_2 = arith.constant dense<0.000000e+00> : vector<16xf32>
    %8 = vector.multi_reduction <add>, %7, %cst_2 [1] : vector<16x32xf32> to vector<16xf32>
    %9 = vector.shape_cast %8 : vector<16xf32> to vector<16x1xf32>
    %cst_3 = arith.constant 3.200000e+01 : f32
    %10 = vector.broadcast %cst_3 : f32 to vector<16x1xf32>
    %11 = arith.divf %9, %10 : vector<16x1xf32>
    %cst_4 = arith.constant 9.99999974E-6 : f32
    %12 = vector.broadcast %cst_4 : f32 to vector<16x1xf32>
    %13 = arith.addf %11, %12 : vector<16x1xf32>
    %14 = math.rsqrt %13 : vector<16x1xf32>
    %15 = vector.broadcast %14 : vector<16x1xf32> to vector<16x32xf32>
    %16 = arith.mulf %6, %15 : vector<16x32xf32>
    %c0_5 = arith.constant 0 : index
    %c0_6 = arith.constant 0 : index
    %17 = vector.load %arg3[%c0_5, %c0_6] : memref<1x32xf32, #tpu.memory_space<vmem>>, vector<1x32xf32>
    %18 = vector.broadcast %17 : vector<1x32xf32> to vector<16x32xf32>
    %19 = arith.mulf %16, %18 : vector<16x32xf32>
    %c0_7 = arith.constant 0 : index
    %c0_8 = arith.constant 0 : index
    %20 = vector.load %arg4[%c0_7, %c0_8] : memref<1x32xf32, #tpu.memory_space<vmem>>, vector<1x32xf32>
    %21 = vector.broadcast %20 : vector<1x32xf32> to vector<16x32xf32>
    %22 = arith.addf %19, %21 : vector<16x32xf32>
    %23 = arith.truncf %22 : vector<16x32xf32> to vector<16x32xbf16>
    %c0_9 = arith.constant 0 : index
    %c0_10 = arith.constant 0 : index
    %24 = vector.load %arg5[%c0_9, %c0_10] : memref<32x96xf32, #tpu.memory_space<vmem>>, vector<32x96xf32>
    %25 = arith.truncf %24 : vector<32x96xf32> to vector<32x96xbf16>
    %cst_11 = arith.constant dense<0.000000e+00> : vector<16x96xf32>
    %26 = tpu.matmul %23, %25, %cst_11 {dimension_numbers = #tpu.dot_dimension_numbers<[1], [0], [0], [1], [0, 0, 1, 1], [], []>} : vector<16x32xbf16>, vector<32x96xbf16>, vector<16x96xf32> -> vector<16x96xf32>
    %c0_12 = arith.constant 0 : index
    %c0_13 = arith.constant 0 : index
    %27 = vector.load %arg6[%c0_12, %c0_13] : memref<16x96xf32, #tpu.memory_space<vmem>>, vector<16x96xf32>
    tpu.vector_store %arg6[%c0_12, %c0_13], %26 {strides = array<i32>} : memref<16x96xf32, #tpu.memory_space<vmem>>, vector<16x96xf32>,
    return
  }
  func.func @transform_0(%arg0: i32, %arg1: i32) -> (i32, i32) {
    %c0_i32 = arith.constant 0 : i32
    %c0_i32_0 = arith.constant 0 : i32
    return %arg0, %c0_i32 : i32, i32
  }
  func.func @transform_1(%arg0: i32, %arg1: i32) -> (i32, i32) {
    %c0_i32 = arith.constant 0 : i32
    %c0_i32_0 = arith.constant 0 : i32
    %c0_i32_1 = arith.constant 0 : i32
    return %c0_i32, %c0_i32_0 : i32, i32
  }
  func.func @transform_2(%arg0: i32, %arg1: i32) -> (i32, i32) {
    %c0_i32 = arith.constant 0 : i32
    %c0_i32_0 = arith.constant 0 : i32
    %c0_i32_1 = arith.constant 0 : i32
    return %c0_i32, %c0_i32_0 : i32, i32
  }
  func.func @transform_3(%arg0: i32, %arg1: i32) -> (i32, i32) {
    %c0_i32 = arith.constant 0 : i32
    %c0_i32_0 = arith.constant 0 : i32
    return %c0_i32, %arg1 : i32, i32
  }
  func.func @transform_4(%arg0: i32, %arg1: i32) -> (i32, i32) {
    %c0_i32 = arith.constant 0 : i32
    return %arg0, %arg1 : i32, i32
  }
}

module attributes {stable_mosaic.version = 11 : i64} {
  func.func @_matmul_kernel(%arg0: i32, %arg1: i32, %arg2: i32, %arg3: memref<16x32xf32, #tpu.memory_space<vmem>>, %arg4: memref<32x32xf32, #tpu.memory_space<vmem>>, %arg5: memref<1x32xf32, #tpu.memory_space<vmem>>, %arg6: memref<16x32xf32, #tpu.memory_space<vmem>>, %arg7: memref<16x32xf32, #tpu.memory_space<vmem>>) attributes {dimension_semantics = [#tpu.dimension_semantics<parallel>, #tpu.dimension_semantics<parallel>, #tpu.dimension_semantics<arbitrary>], iteration_bounds = array<i64: 1, 1, 1>, scalar_prefetch = 0 : i64, scratch_operands = 1 : i64, tpu.core_type = #tpu.core_type<tc>, window_params = [{transform_indices = @transform_0, window_bounds = array<i64: 16, 32>}, {transform_indices = @transform_1, window_bounds = array<i64: 32, 32>}, {transform_indices = @transform_2, window_bounds = array<i64: 1, 32>}, {transform_indices = @transform_3, window_bounds = array<i64: 16, 32>}]} {
    %c0_i32 = arith.constant 0 : i32
    %0 = arith.cmpi eq, %arg2, %c0_i32 : i32
    %1 = arith.extui %0 : i1 to i32
    %c0_i32_0 = arith.constant 0 : i32
    %2 = arith.cmpi ne, %1, %c0_i32_0 : i32
    scf.if %2 {
      %cst_10 = arith.constant 0.000000e+00 : f32
      %14 = vector.broadcast %cst_10 : f32 to vector<16x32xf32>
      %c0_11 = arith.constant 0 : index
      %c0_12 = arith.constant 0 : index
      %15 = vector.load %arg7[%c0_11, %c0_12] : memref<16x32xf32, #tpu.memory_space<vmem>>, vector<16x32xf32>
      tpu.vector_store %arg7[%c0_11, %c0_12], %14 {strides = array<i32>} : memref<16x32xf32, #tpu.memory_space<vmem>>, vector<16x32xf32>,
    } else {
    }
    %c0 = arith.constant 0 : index
    %c0_1 = arith.constant 0 : index
    %3 = vector.load %arg7[%c0, %c0_1] : memref<16x32xf32, #tpu.memory_space<vmem>>, vector<16x32xf32>
    %c0_2 = arith.constant 0 : index
    %c0_3 = arith.constant 0 : index
    %4 = vector.load %arg3[%c0_2, %c0_3] : memref<16x32xf32, #tpu.memory_space<vmem>>, vector<16x32xf32>
    %5 = arith.truncf %4 : vector<16x32xf32> to vector<16x32xbf16>
    %c0_4 = arith.constant 0 : index
    %c0_5 = arith.constant 0 : index
    %6 = vector.load %arg4[%c0_4, %c0_5] : memref<32x32xf32, #tpu.memory_space<vmem>>, vector<32x32xf32>
    %7 = arith.truncf %6 : vector<32x32xf32> to vector<32x32xbf16>
    %cst = arith.constant dense<0.000000e+00> : vector<16x32xf32>
    %8 = tpu.matmul %5, %7, %cst {dimension_numbers = #tpu.dot_dimension_numbers<[1], [0], [0], [1], [0, 0, 1, 1], [], []>} : vector<16x32xbf16>, vector<32x32xbf16>, vector<16x32xf32> -> vector<16x32xf32>
    %9 = arith.addf %3, %8 : vector<16x32xf32>
    %c0_6 = arith.constant 0 : index
    %c0_7 = arith.constant 0 : index
    %10 = vector.load %arg7[%c0_6, %c0_7] : memref<16x32xf32, #tpu.memory_space<vmem>>, vector<16x32xf32>
    tpu.vector_store %arg7[%c0_6, %c0_7], %9 {strides = array<i32>} : memref<16x32xf32, #tpu.memory_space<vmem>>, vector<16x32xf32>,
    %c0_i32_8 = arith.constant 0 : i32
    %11 = arith.cmpi eq, %arg2, %c0_i32_8 : i32
    %12 = arith.extui %11 : i1 to i32
    %c0_i32_9 = arith.constant 0 : i32
    %13 = arith.cmpi ne, %12, %c0_i32_9 : i32
    scf.if %13 {
      %c0_10 = arith.constant 0 : index
      %c0_11 = arith.constant 0 : index
      %14 = vector.load %arg7[%c0_10, %c0_11] : memref<16x32xf32, #tpu.memory_space<vmem>>, vector<16x32xf32>
      %c0_12 = arith.constant 0 : index
      %c0_13 = arith.constant 0 : index
      %15 = vector.load %arg5[%c0_12, %c0_13] : memref<1x32xf32, #tpu.memory_space<vmem>>, vector<1x32xf32>
      %16 = vector.broadcast %15 : vector<1x32xf32> to vector<16x32xf32>
      %17 = arith.addf %14, %16 : vector<16x32xf32>
      %c0_14 = arith.constant 0 : index
      %c0_15 = arith.constant 0 : index
      %18 = vector.load %arg6[%c0_14, %c0_15] : memref<16x32xf32, #tpu.memory_space<vmem>>, vector<16x32xf32>
      tpu.vector_store %arg6[%c0_14, %c0_15], %17 {strides = array<i32>} : memref<16x32xf32, #tpu.memory_space<vmem>>, vector<16x32xf32>,
    } else {
    }
    return
  }
  func.func @transform_0(%arg0: i32, %arg1: i32, %arg2: i32) -> (i32, i32) {
    %c0_i32 = arith.constant 0 : i32
    return %arg0, %arg2 : i32, i32
  }
  func.func @transform_1(%arg0: i32, %arg1: i32, %arg2: i32) -> (i32, i32) {
    %c0_i32 = arith.constant 0 : i32
    return %arg2, %arg1 : i32, i32
  }
  func.func @transform_2(%arg0: i32, %arg1: i32, %arg2: i32) -> (i32, i32) {
    %c0_i32 = arith.constant 0 : i32
    %c0_i32_0 = arith.constant 0 : i32
    return %c0_i32, %arg1 : i32, i32
  }
  func.func @transform_3(%arg0: i32, %arg1: i32, %arg2: i32) -> (i32, i32) {
    %c0_i32 = arith.constant 0 : i32
    return %arg0, %arg1 : i32, i32
  }
}

module attributes {stable_mosaic.version = 11 : i64} {
  func.func @_flash_attn_kernel(%arg0: i32, %arg1: i32, %arg2: i32, %arg3: memref<1x8x16xf32, #tpu.memory_space<vmem>>, %arg4: memref<1x8x16xf32, #tpu.memory_space<vmem>>, %arg5: memref<1x8x16xf32, #tpu.memory_space<vmem>>, %arg6: memref<1x8x16xf32, #tpu.memory_space<vmem>>, %arg7: memref<8x1xf32, #tpu.memory_space<vmem>>, %arg8: memref<8x1xf32, #tpu.memory_space<vmem>>, %arg9: memref<8x16xf32, #tpu.memory_space<vmem>>) attributes {dimension_semantics = [#tpu.dimension_semantics<parallel>, #tpu.dimension_semantics<parallel>, #tpu.dimension_semantics<arbitrary>], iteration_bounds = array<i64: 4, 1, 1>, scalar_prefetch = 0 : i64, scratch_operands = 3 : i64, tpu.core_type = #tpu.core_type<tc>, window_params = [{transform_indices = @transform_0, window_bounds = array<i64: 1, 8, 16>}, {transform_indices = @transform_1, window_bounds = array<i64: 1, 8, 16>}, {transform_indices = @transform_2, window_bounds = array<i64: 1, 8, 16>}, {transform_indices = @transform_3, window_bounds = array<i64: 1, 8, 16>}]} {
    %c0_i32 = arith.constant 0 : i32
    %0 = arith.cmpi eq, %arg2, %c0_i32 : i32
    %1 = arith.extui %0 : i1 to i32
    %c0_i32_0 = arith.constant 0 : i32
    %2 = arith.cmpi ne, %1, %c0_i32_0 : i32
    scf.if %2 {
      %cst = arith.constant 0xFF800000 : f32
      %12 = vector.broadcast %cst : f32 to vector<8x1xf32>
      %c0 = arith.constant 0 : index
      %c0_5 = arith.constant 0 : index
      %13 = vector.load %arg7[%c0, %c0_5] : memref<8x1xf32, #tpu.memory_space<vmem>>, vector<8x1xf32>
      tpu.vector_store %arg7[%c0, %c0_5], %12 {strides = array<i32>} : memref<8x1xf32, #tpu.memory_space<vmem>>, vector<8x1xf32>,
      %cst_6 = arith.constant 0.000000e+00 : f32
      %14 = vector.broadcast %cst_6 : f32 to vector<8x1xf32>
      %c0_7 = arith.constant 0 : index
      %c0_8 = arith.constant 0 : index
      %15 = vector.load %arg8[%c0_7, %c0_8] : memref<8x1xf32, #tpu.memory_space<vmem>>, vector<8x1xf32>
      tpu.vector_store %arg8[%c0_7, %c0_8], %14 {strides = array<i32>} : memref<8x1xf32, #tpu.memory_space<vmem>>, vector<8x1xf32>,
      %cst_9 = arith.constant 0.000000e+00 : f32
      %16 = vector.broadcast %cst_9 : f32 to vector<8x16xf32>
      %c0_10 = arith.constant 0 : index
      %c0_11 = arith.constant 0 : index
      %17 = vector.load %arg9[%c0_10, %c0_11] : memref<8x16xf32, #tpu.memory_space<vmem>>, vector<8x16xf32>
      tpu.vector_store %arg9[%c0_10, %c0_11], %16 {strides = array<i32>} : memref<8x16xf32, #tpu.memory_space<vmem>>, vector<8x16xf32>,
    } else {
    }
    %c8_i32 = arith.constant 8 : i32
    %3 = arith.muli %arg2, %c8_i32 : i32
    %c8_i32_1 = arith.constant 8 : i32
    %4 = arith.muli %arg1, %c8_i32_1 : i32
    %c7_i32 = arith.constant 7 : i32
    %5 = arith.addi %4, %c7_i32 : i32
    %6 = arith.cmpi sle, %3, %5 : i32
    %7 = arith.extui %6 : i1 to i32
    %c0_i32_2 = arith.constant 0 : i32
    %8 = arith.cmpi ne, %7, %c0_i32_2 : i32
    scf.if %8 {
      %c0 = arith.constant 0 : index
      %c0_5 = arith.constant 0 : index
      %c0_6 = arith.constant 0 : index
      %12 = vector.load %arg3[%c0, %c0_5, %c0_6] : memref<1x8x16xf32, #tpu.memory_space<vmem>>, vector<1x8x16xf32>
      %13 = vector.shape_cast %12 : vector<1x8x16xf32> to vector<8x16xf32>
      %cst = arith.constant 2.500000e-01 : f32
      %14 = vector.broadcast %cst : f32 to vector<8x16xf32>
      %15 = arith.mulf %13, %14 : vector<8x16xf32>
      %16 = arith.truncf %15 : vector<8x16xf32> to vector<8x16xbf16>
      %c0_7 = arith.constant 0 : index
      %c0_8 = arith.constant 0 : index
      %c0_9 = arith.constant 0 : index
      %17 = vector.load %arg4[%c0_7, %c0_8, %c0_9] : memref<1x8x16xf32, #tpu.memory_space<vmem>>, vector<1x8x16xf32>
      %18 = vector.shape_cast %17 : vector<1x8x16xf32> to vector<8x16xf32>
      %19 = arith.truncf %18 : vector<8x16xf32> to vector<8x16xbf16>
      %cst_10 = arith.constant dense<0.000000e+00> : vector<8x8xf32>
      %20 = tpu.matmul %16, %19, %cst_10 {dimension_numbers = #tpu.dot_dimension_numbers<[1], [1], [0], [0], [0, 0, 1, 0], [], []>} : vector<8x16xbf16>, vector<8x16xbf16>, vector<8x8xf32> -> vector<8x8xf32>
      %c8_i32_11 = arith.constant 8 : i32
      %21 = arith.muli %arg2, %c8_i32_11 : i32
      %22 = tpu.iota {dimensions = array<i32: 1>} : vector<8x8xi32>
      %23 = vector.broadcast %21 : i32 to vector<8x8xi32>
      %24 = arith.addi %23, %22 : vector<8x8xi32>
      %c8_i32_12 = arith.constant 8 : i32
      %25 = arith.muli %arg1, %c8_i32_12 : i32
      %26 = tpu.iota {dimensions = array<i32: 0>} : vector<8x8xi32>
      %27 = vector.broadcast %25 : i32 to vector<8x8xi32>
      %28 = arith.addi %27, %26 : vector<8x8xi32>
      %29 = arith.cmpi sgt, %24, %28 : vector<8x8xi32>
      %cst_13 = arith.constant -1.000000e+30 : f32
      %30 = vector.broadcast %cst_13 : f32 to vector<8x8xf32>
      %31 = arith.select %29, %30, %20 : vector<8x8xi1>, vector<8x8xf32>
      %c0_14 = arith.constant 0 : index
      %c0_15 = arith.constant 0 : index
      %32 = vector.load %arg7[%c0_14, %c0_15] : memref<8x1xf32, #tpu.memory_space<vmem>>, vector<8x1xf32>
      %cst_16 = arith.constant dense<0xFF800000> : vector<8xf32>
      %33 = vector.multi_reduction <maximumf>, %31, %cst_16 [1] : vector<8x8xf32> to vector<8xf32>
      %34 = vector.shape_cast %33 : vector<8xf32> to vector<8x1xf32>
      %35 = arith.maximumf %32, %34 : vector<8x1xf32>
      %36 = arith.subf %32, %35 : vector<8x1xf32>
      %37 = math.exp %36 : vector<8x1xf32>
      %38 = vector.broadcast %35 : vector<8x1xf32> to vector<8x8xf32>
      %39 = arith.subf %31, %38 : vector<8x8xf32>
      %40 = math.exp %39 : vector<8x8xf32>
      %c0_17 = arith.constant 0 : index
      %c0_18 = arith.constant 0 : index
      %41 = vector.load %arg8[%c0_17, %c0_18] : memref<8x1xf32, #tpu.memory_space<vmem>>, vector<8x1xf32>
      %42 = arith.mulf %37, %41 : vector<8x1xf32>
      %cst_19 = arith.constant dense<0.000000e+00> : vector<8xf32>
      %43 = vector.multi_reduction <add>, %40, %cst_19 [1] : vector<8x8xf32> to vector<8xf32>
      %44 = vector.shape_cast %43 : vector<8xf32> to vector<8x1xf32>
      %45 = arith.addf %42, %44 : vector<8x1xf32>
      %c0_20 = arith.constant 0 : index
      %c0_21 = arith.constant 0 : index
      %46 = vector.load %arg8[%c0_20, %c0_21] : memref<8x1xf32, #tpu.memory_space<vmem>>, vector<8x1xf32>
      tpu.vector_store %arg8[%c0_20, %c0_21], %45 {strides = array<i32>} : memref<8x1xf32, #tpu.memory_space<vmem>>, vector<8x1xf32>,
      %c0_22 = arith.constant 0 : index
      %c0_23 = arith.constant 0 : index
      %47 = vector.load %arg9[%c0_22, %c0_23] : memref<8x16xf32, #tpu.memory_space<vmem>>, vector<8x16xf32>
      %48 = vector.broadcast %37 : vector<8x1xf32> to vector<8x16xf32>
      %49 = arith.mulf %48, %47 : vector<8x16xf32>
      %50 = arith.truncf %40 : vector<8x8xf32> to vector<8x8xbf16>
      %c0_24 = arith.constant 0 : index
      %c0_25 = arith.constant 0 : index
      %c0_26 = arith.constant 0 : index
      %51 = vector.load %arg5[%c0_24, %c0_25, %c0_26] : memref<1x8x16xf32, #tpu.memory_space<vmem>>, vector<1x8x16xf32>
      %52 = vector.shape_cast %51 : vector<1x8x16xf32> to vector<8x16xf32>
      %53 = arith.truncf %52 : vector<8x16xf32> to vector<8x16xbf16>
      %cst_27 = arith.constant dense<0.000000e+00> : vector<8x16xf32>
      %54 = tpu.matmul %50, %53, %cst_27 {dimension_numbers = #tpu.dot_dimension_numbers<[1], [0], [0], [1], [0, 0, 1, 1], [], []>} : vector<8x8xbf16>, vector<8x16xbf16>, vector<8x16xf32> -> vector<8x16xf32>
      %55 = arith.addf %49, %54 : vector<8x16xf32>
      %c0_28 = arith.constant 0 : index
      %c0_29 = arith.constant 0 : index
      %56 = vector.load %arg9[%c0_28, %c0_29] : memref<8x16xf32, #tpu.memory_space<vmem>>, vector<8x16xf32>
      tpu.vector_store %arg9[%c0_28, %c0_29], %55 {strides = array<i32>} : memref<8x16xf32, #tpu.memory_space<vmem>>, vector<8x16xf32>,
      %c0_30 = arith.constant 0 : index
      %c0_31 = arith.constant 0 : index
      %57 = vector.load %arg7[%c0_30, %c0_31] : memref<8x1xf32, #tpu.memory_space<vmem>>, vector<8x1xf32>
      tpu.vector_store %arg7[%c0_30, %c0_31], %35 {strides = array<i32>} : memref<8x1xf32, #tpu.memory_space<vmem>>, vector<8x1xf32>,
    } else {
    }
    %c0_i32_3 = arith.constant 0 : i32
    %9 = arith.cmpi eq, %arg2, %c0_i32_3 : i32
    %10 = arith.extui %9 : i1 to i32
    %c0_i32_4 = arith.constant 0 : i32
    %11 = arith.cmpi ne, %10, %c0_i32_4 : i32
    scf.if %11 {
      %c0 = arith.constant 0 : index
      %c0_5 = arith.constant 0 : index
      %12 = vector.load %arg9[%c0, %c0_5] : memref<8x16xf32, #tpu.memory_space<vmem>>, vector<8x16xf32>
      %c0_6 = arith.constant 0 : index
      %c0_7 = arith.constant 0 : index
      %13 = vector.load %arg8[%c0_6, %c0_7] : memref<8x1xf32, #tpu.memory_space<vmem>>, vector<8x1xf32>
      %14 = tpu.reciprocal %13 {approx = true} : vector<8x1xf32> -> vector<8x1xf32>
      %15 = vector.broadcast %14 : vector<8x1xf32> to vector<8x16xf32>
      %16 = arith.mulf %12, %15 : vector<8x16xf32>
      %17 = vector.shape_cast %16 : vector<8x16xf32> to vector<1x8x16xf32>
      %c0_8 = arith.constant 0 : index
      %c0_9 = arith.constant 0 : index
      %c0_10 = arith.constant 0 : index
      %18 = vector.load %arg6[%c0_8, %c0_9, %c0_10] : memref<1x8x16xf32, #tpu.memory_space<vmem>>, vector<1x8x16xf32>
      tpu.vector_store %arg6[%c0_8, %c0_9, %c0_10], %17 {strides = array<i32>} : memref<1x8x16xf32, #tpu.memory_space<vmem>>, vector<1x8x16xf32>,
    } else {
    }
    return
  }
  func.func @transform_0(%arg0: i32, %arg1: i32, %arg2: i32) -> (i32, i32, i32) {
    %c0_i32 = arith.constant 0 : i32
    %c0_i32_0 = arith.constant 0 : i32
    return %arg0, %arg1, %c0_i32 : i32, i32, i32
  }
  func.func @transform_1(%arg0: i32, %arg1: i32, %arg2: i32) -> (i32, i32, i32) {
    %c0_i32 = arith.constant 0 : i32
    %c0_i32_0 = arith.constant 0 : i32
    return %arg0, %arg2, %c0_i32 : i32, i32, i32
  }
  func.func @transform_2(%arg0: i32, %arg1: i32, %arg2: i32) -> (i32, i32, i32) {
    %c0_i32 = arith.constant 0 : i32
    %c0_i32_0 = arith.constant 0 : i32
    return %arg0, %arg2, %c0_i32 : i32, i32, i32
  }
  func.func @transform_3(%arg0: i32, %arg1: i32, %arg2: i32) -> (i32, i32, i32) {
    %c0_i32 = arith.constant 0 : i32
    %c0_i32_0 = arith.constant 0 : i32
    return %arg0, %arg1, %c0_i32 : i32, i32, i32
  }
}

module attributes {stable_mosaic.version = 11 : i64} {
  func.func @_ln_matmul_kernel(%arg0: i32, %arg1: i32, %arg2: memref<16x32xf32, #tpu.memory_space<vmem>>, %arg3: memref<1x32xf32, #tpu.memory_space<vmem>>, %arg4: memref<1x32xf32, #tpu.memory_space<vmem>>, %arg5: memref<32x128xf32, #tpu.memory_space<vmem>>, %arg6: memref<1x128xf32, #tpu.memory_space<vmem>>, %arg7: memref<16x128xf32, #tpu.memory_space<vmem>>) attributes {dimension_semantics = [#tpu.dimension_semantics<parallel>, #tpu.dimension_semantics<parallel>], iteration_bounds = array<i64: 1, 1>, scalar_prefetch = 0 : i64, scratch_operands = 0 : i64, tpu.core_type = #tpu.core_type<tc>, window_params = [{transform_indices = @transform_0, window_bounds = array<i64: 16, 32>}, {pipeline_mode = #tpu.pipeline_mode<synchronous>, transform_indices = @transform_1, window_bounds = array<i64: 1, 32>}, {pipeline_mode = #tpu.pipeline_mode<synchronous>, transform_indices = @transform_2, window_bounds = array<i64: 1, 32>}, {transform_indices = @transform_3, window_bounds = array<i64: 32, 128>}, {transform_indices = @transform_4, window_bounds = array<i64: 1, 128>}, {transform_indices = @transform_5, window_bounds = array<i64: 16, 128>}]} {
    %c0 = arith.constant 0 : index
    %c0_0 = arith.constant 0 : index
    %0 = vector.load %arg2[%c0, %c0_0] : memref<16x32xf32, #tpu.memory_space<vmem>>, vector<16x32xf32>
    %cst = arith.constant dense<0.000000e+00> : vector<16xf32>
    %1 = vector.multi_reduction <add>, %0, %cst [1] : vector<16x32xf32> to vector<16xf32>
    %2 = vector.shape_cast %1 : vector<16xf32> to vector<16x1xf32>
    %cst_1 = arith.constant 3.200000e+01 : f32
    %3 = vector.broadcast %cst_1 : f32 to vector<16x1xf32>
    %4 = arith.divf %2, %3 : vector<16x1xf32>
    %5 = vector.broadcast %4 : vector<16x1xf32> to vector<16x32xf32>
    %6 = arith.subf %0, %5 : vector<16x32xf32>
    %7 = arith.mulf %6, %6 : vector<16x32xf32>
    %cst_2 = arith.constant dense<0.000000e+00> : vector<16xf32>
    %8 = vector.multi_reduction <add>, %7, %cst_2 [1] : vector<16x32xf32> to vector<16xf32>
    %9 = vector.shape_cast %8 : vector<16xf32> to vector<16x1xf32>
    %cst_3 = arith.constant 3.200000e+01 : f32
    %10 = vector.broadcast %cst_3 : f32 to vector<16x1xf32>
    %11 = arith.divf %9, %10 : vector<16x1xf32>
    %cst_4 = arith.constant 9.99999974E-6 : f32
    %12 = vector.broadcast %cst_4 : f32 to vector<16x1xf32>
    %13 = arith.addf %11, %12 : vector<16x1xf32>
    %14 = math.rsqrt %13 : vector<16x1xf32>
    %15 = vector.broadcast %14 : vector<16x1xf32> to vector<16x32xf32>
    %16 = arith.mulf %6, %15 : vector<16x32xf32>
    %c0_5 = arith.constant 0 : index
    %c0_6 = arith.constant 0 : index
    %17 = vector.load %arg3[%c0_5, %c0_6] : memref<1x32xf32, #tpu.memory_space<vmem>>, vector<1x32xf32>
    %18 = vector.broadcast %17 : vector<1x32xf32> to vector<16x32xf32>
    %19 = arith.mulf %16, %18 : vector<16x32xf32>
    %c0_7 = arith.constant 0 : index
    %c0_8 = arith.constant 0 : index
    %20 = vector.load %arg4[%c0_7, %c0_8] : memref<1x32xf32, #tpu.memory_space<vmem>>, vector<1x32xf32>
    %21 = vector.broadcast %20 : vector<1x32xf32> to vector<16x32xf32>
    %22 = arith.addf %19, %21 : vector<16x32xf32>
    %23 = arith.truncf %22 : vector<16x32xf32> to vector<16x32xbf16>
    %c0_9 = arith.constant 0 : index
    %c0_10 = arith.constant 0 : index
    %24 = vector.load %arg5[%c0_9, %c0_10] : memref<32x128xf32, #tpu.memory_space<vmem>>, vector<32x128xf32>
    %25 = arith.truncf %24 : vector<32x128xf32> to vector<32x128xbf16>
    %cst_11 = arith.constant dense<0.000000e+00> : vector<16x128xf32>
    %26 = tpu.matmul %23, %25, %cst_11 {dimension_numbers = #tpu.dot_dimension_numbers<[1], [0], [0], [1], [0, 0, 1, 1], [], []>} : vector<16x32xbf16>, vector<32x128xbf16>, vector<16x128xf32> -> vector<16x128xf32>
    %c0_12 = arith.constant 0 : index
    %c0_13 = arith.constant 0 : index
    %27 = vector.load %arg6[%c0_12, %c0_13] : memref<1x128xf32, #tpu.memory_space<vmem>>, vector<1x128xf32>
    %28 = vector.broadcast %27 : vector<1x128xf32> to vector<16x128xf32>
    %29 = arith.addf %26, %28 : vector<16x128xf32>
    %cst_14 = arith.constant 0.000000e+00 : f32
    %30 = vector.broadcast %cst_14 : f32 to vector<16x128xf32>
    %31 = arith.maximumf %29, %30 : vector<16x128xf32>
    %32 = arith.mulf %31, %31 : vector<16x128xf32>
    %c0_15 = arith.constant 0 : index
    %c0_16 = arith.constant 0 : index
    %33 = vector.load %arg7[%c0_15, %c0_16] : memref<16x128xf32, #tpu.memory_space<vmem>>, vector<16x128xf32>
    tpu.vector_store %arg7[%c0_15, %c0_16], %32 {strides = array<i32>} : memref<16x128xf32, #tpu.memory_space<vmem>>, vector<16x128xf32>,
    return
  }
  func.func @transform_0(%arg0: i32, %arg1: i32) -> (i32, i32) {
    %c0_i32 = arith.constant 0 : i32
    %c0_i32_0 = arith.constant 0 : i32
    return %arg0, %c0_i32 : i32, i32
  }
  func.func @transform_1(%arg0: i32, %arg1: i32) -> (i32, i32) {
    %c0_i32 = arith.constant 0 : i32
    %c0_i32_0 = arith.constant 0 : i32
    %c0_i32_1 = arith.constant 0 : i32
    return %c0_i32, %c0_i32_0 : i32, i32
  }
  func.func @transform_2(%arg0: i32, %arg1: i32) -> (i32, i32) {
    %c0_i32 = arith.constant 0 : i32
    %c0_i32_0 = arith.constant 0 : i32
    %c0_i32_1 = arith.constant 0 : i32
    return %c0_i32, %c0_i32_0 : i32, i32
  }
  func.func @transform_3(%arg0: i32, %arg1: i32) -> (i32, i32) {
    %c0_i32 = arith.constant 0 : i32
    %c0_i32_0 = arith.constant 0 : i32
    return %c0_i32, %arg1 : i32, i32
  }
  func.func @transform_4(%arg0: i32, %arg1: i32) -> (i32, i32) {
    %c0_i32 = arith.constant 0 : i32
    %c0_i32_0 = arith.constant 0 : i32
    return %c0_i32, %arg1 : i32, i32
  }
  func.func @transform_5(%arg0: i32, %arg1: i32) -> (i32, i32) {
    %c0_i32 = arith.constant 0 : i32
    return %arg0, %arg1 : i32, i32
  }
}

module attributes {stable_mosaic.version = 11 : i64} {
  func.func @_matmul_kernel(%arg0: i32, %arg1: i32, %arg2: i32, %arg3: memref<16x128xf32, #tpu.memory_space<vmem>>, %arg4: memref<128x32xf32, #tpu.memory_space<vmem>>, %arg5: memref<1x32xf32, #tpu.memory_space<vmem>>, %arg6: memref<16x32xf32, #tpu.memory_space<vmem>>, %arg7: memref<16x32xf32, #tpu.memory_space<vmem>>) attributes {dimension_semantics = [#tpu.dimension_semantics<parallel>, #tpu.dimension_semantics<parallel>, #tpu.dimension_semantics<arbitrary>], iteration_bounds = array<i64: 1, 1, 1>, scalar_prefetch = 0 : i64, scratch_operands = 1 : i64, tpu.core_type = #tpu.core_type<tc>, window_params = [{transform_indices = @transform_0, window_bounds = array<i64: 16, 128>}, {transform_indices = @transform_1, window_bounds = array<i64: 128, 32>}, {transform_indices = @transform_2, window_bounds = array<i64: 1, 32>}, {transform_indices = @transform_3, window_bounds = array<i64: 16, 32>}]} {
    %c0_i32 = arith.constant 0 : i32
    %0 = arith.cmpi eq, %arg2, %c0_i32 : i32
    %1 = arith.extui %0 : i1 to i32
    %c0_i32_0 = arith.constant 0 : i32
    %2 = arith.cmpi ne, %1, %c0_i32_0 : i32
    scf.if %2 {
      %cst_10 = arith.constant 0.000000e+00 : f32
      %14 = vector.broadcast %cst_10 : f32 to vector<16x32xf32>
      %c0_11 = arith.constant 0 : index
      %c0_12 = arith.constant 0 : index
      %15 = vector.load %arg7[%c0_11, %c0_12] : memref<16x32xf32, #tpu.memory_space<vmem>>, vector<16x32xf32>
      tpu.vector_store %arg7[%c0_11, %c0_12], %14 {strides = array<i32>} : memref<16x32xf32, #tpu.memory_space<vmem>>, vector<16x32xf32>,
    } else {
    }
    %c0 = arith.constant 0 : index
    %c0_1 = arith.constant 0 : index
    %3 = vector.load %arg7[%c0, %c0_1] : memref<16x32xf32, #tpu.memory_space<vmem>>, vector<16x32xf32>
    %c0_2 = arith.constant 0 : index
    %c0_3 = arith.constant 0 : index
    %4 = vector.load %arg3[%c0_2, %c0_3] : memref<16x128xf32, #tpu.memory_space<vmem>>, vector<16x128xf32>
    %5 = arith.truncf %4 : vector<16x128xf32> to vector<16x128xbf16>
    %c0_4 = arith.constant 0 : index
    %c0_5 = arith.constant 0 : index
    %6 = vector.load %arg4[%c0_4, %c0_5] : memref<128x32xf32, #tpu.memory_space<vmem>>, vector<128x32xf32>
    %7 = arith.truncf %6 : vector<128x32xf32> to vector<128x32xbf16>
    %cst = arith.constant dense<0.000000e+00> : vector<16x32xf32>
    %8 = tpu.matmul %5, %7, %cst {dimension_numbers = #tpu.dot_dimension_numbers<[1], [0], [0], [1], [0, 0, 1, 1], [], []>} : vector<16x128xbf16>, vector<128x32xbf16>, vector<16x32xf32> -> vector<16x32xf32>
    %9 = arith.addf %3, %8 : vector<16x32xf32>
    %c0_6 = arith.constant 0 : index
    %c0_7 = arith.constant 0 : index
    %10 = vector.load %arg7[%c0_6, %c0_7] : memref<16x32xf32, #tpu.memory_space<vmem>>, vector<16x32xf32>
    tpu.vector_store %arg7[%c0_6, %c0_7], %9 {strides = array<i32>} : memref<16x32xf32, #tpu.memory_space<vmem>>, vector<16x32xf32>,
    %c0_i32_8 = arith.constant 0 : i32
    %11 = arith.cmpi eq, %arg2, %c0_i32_8 : i32
    %12 = arith.extui %11 : i1 to i32
    %c0_i32_9 = arith.constant 0 : i32
    %13 = arith.cmpi ne, %12, %c0_i32_9 : i32
    scf.if %13 {
      %c0_10 = arith.constant 0 : index
      %c0_11 = arith.constant 0 : index
      %14 = vector.load %arg7[%c0_10, %c0_11] : memref<16x32xf32, #tpu.memory_space<vmem>>, vector<16x32xf32>
      %c0_12 = arith.constant 0 : index
      %c0_13 = arith.constant 0 : index
      %15 = vector.load %arg5[%c0_12, %c0_13] : memref<1x32xf32, #tpu.memory_space<vmem>>, vector<1x32xf32>
      %16 = vector.broadcast %15 : vector<1x32xf32> to vector<16x32xf32>
      %17 = arith.addf %14, %16 : vector<16x32xf32>
      %c0_14 = arith.constant 0 : index
      %c0_15 = arith.constant 0 : index
      %18 = vector.load %arg6[%c0_14, %c0_15] : memref<16x32xf32, #tpu.memory_space<vmem>>, vector<16x32xf32>
      tpu.vector_store %arg6[%c0_14, %c0_15], %17 {strides = array<i32>} : memref<16x32xf32, #tpu.memory_space<vmem>>, vector<16x32xf32>,
    } else {
    }
    return
  }
  func.func @transform_0(%arg0: i32, %arg1: i32, %arg2: i32) -> (i32, i32) {
    %c0_i32 = arith.constant 0 : i32
    return %arg0, %arg2 : i32, i32
  }
  func.func @transform_1(%arg0: i32, %arg1: i32, %arg2: i32) -> (i32, i32) {
    %c0_i32 = arith.constant 0 : i32
    return %arg2, %arg1 : i32, i32
  }
  func.func @transform_2(%arg0: i32, %arg1: i32, %arg2: i32) -> (i32, i32) {
    %c0_i32 = arith.constant 0 : i32
    %c0_i32_0 = arith.constant 0 : i32
    return %c0_i32, %arg1 : i32, i32
  }
  func.func @transform_3(%arg0: i32, %arg1: i32, %arg2: i32) -> (i32, i32) {
    %c0_i32 = arith.constant 0 : i32
    return %arg0, %arg1 : i32, i32
  }
}

module attributes {stable_mosaic.version = 11 : i64} {
  func.func @_ln_matmul_kernel(%arg0: i32, %arg1: i32, %arg2: memref<16x32xf32, #tpu.memory_space<vmem>>, %arg3: memref<1x32xf32, #tpu.memory_space<vmem>>, %arg4: memref<1x32xf32, #tpu.memory_space<vmem>>, %arg5: memref<32x64xf32, #tpu.memory_space<vmem>>, %arg6: memref<1x64xf32, #tpu.memory_space<vmem>>, %arg7: memref<16x64xf32, #tpu.memory_space<vmem>>) attributes {dimension_semantics = [#tpu.dimension_semantics<parallel>, #tpu.dimension_semantics<parallel>], iteration_bounds = array<i64: 1, 1>, scalar_prefetch = 0 : i64, scratch_operands = 0 : i64, tpu.core_type = #tpu.core_type<tc>, window_params = [{transform_indices = @transform_0, window_bounds = array<i64: 16, 32>}, {pipeline_mode = #tpu.pipeline_mode<synchronous>, transform_indices = @transform_1, window_bounds = array<i64: 1, 32>}, {pipeline_mode = #tpu.pipeline_mode<synchronous>, transform_indices = @transform_2, window_bounds = array<i64: 1, 32>}, {transform_indices = @transform_3, window_bounds = array<i64: 32, 64>}, {transform_indices = @transform_4, window_bounds = array<i64: 1, 64>}, {transform_indices = @transform_5, window_bounds = array<i64: 16, 64>}]} {
    %c0 = arith.constant 0 : index
    %c0_0 = arith.constant 0 : index
    %0 = vector.load %arg2[%c0, %c0_0] : memref<16x32xf32, #tpu.memory_space<vmem>>, vector<16x32xf32>
    %cst = arith.constant dense<0xFF800000> : vector<16xf32>
    %1 = vector.multi_reduction <maximumf>, %0, %cst [1] : vector<16x32xf32> to vector<16xf32>
    %2 = vector.shape_cast %1 : vector<16xf32> to vector<16x1xf32>
    %3 = vector.broadcast %2 : vector<16x1xf32> to vector<16x32xf32>
    %4 = arith.divf %0, %3 : vector<16x32xf32>
    %cst_1 = arith.constant dense<0.000000e+00> : vector<16xf32>
    %5 = vector.multi_reduction <add>, %4, %cst_1 [1] : vector<16x32xf32> to vector<16xf32>
    %6 = vector.shape_cast %5 : vector<16xf32> to vector<16x1xf32>
    %cst_2 = arith.constant 3.200000e+01 : f32
    %7 = vector.broadcast %cst_2 : f32 to vector<16x1xf32>
    %8 = arith.divf %6, %7 : vector<16x1xf32>
    %9 = vector.broadcast %8 : vector<16x1xf32> to vector<16x32xf32>
    %10 = arith.subf %4, %9 : vector<16x32xf32>
    %11 = arith.mulf %10, %10 : vector<16x32xf32>
    %cst_3 = arith.constant dense<0.000000e+00> : vector<16xf32>
    %12 = vector.multi_reduction <add>, %11, %cst_3 [1] : vector<16x32xf32> to vector<16xf32>
    %13 = vector.shape_cast %12 : vector<16xf32> to vector<16x1xf32>
    %cst_4 = arith.constant 3.200000e+01 : f32
    %14 = vector.broadcast %cst_4 : f32 to vector<16x1xf32>
    %15 = arith.divf %13, %14 : vector<16x1xf32>
    %cst_5 = arith.constant 9.99999974E-6 : f32
    %16 = vector.broadcast %cst_5 : f32 to vector<16x1xf32>
    %17 = arith.addf %15, %16 : vector<16x1xf32>
    %18 = math.rsqrt %17 : vector<16x1xf32>
    %19 = vector.broadcast %18 : vector<16x1xf32> to vector<16x32xf32>
    %20 = arith.mulf %10, %19 : vector<16x32xf32>
    %c0_6 = arith.constant 0 : index
    %c0_7 = arith.constant 0 : index
    %21 = vector.load %arg3[%c0_6, %c0_7] : memref<1x32xf32, #tpu.memory_space<vmem>>, vector<1x32xf32>
    %22 = vector.broadcast %21 : vector<1x32xf32> to vector<16x32xf32>
    %23 = arith.mulf %20, %22 : vector<16x32xf32>
    %c0_8 = arith.constant 0 : index
    %c0_9 = arith.constant 0 : index
    %24 = vector.load %arg4[%c0_8, %c0_9] : memref<1x32xf32, #tpu.memory_space<vmem>>, vector<1x32xf32>
    %25 = vector.broadcast %24 : vector<1x32xf32> to vector<16x32xf32>
    %26 = arith.addf %23, %25 : vector<16x32xf32>
    %27 = arith.truncf %26 : vector<16x32xf32> to vector<16x32xbf16>
    %c0_10 = arith.constant 0 : index
    %c0_11 = arith.constant 0 : index
    %28 = vector.load %arg5[%c0_10, %c0_11] : memref<32x64xf32, #tpu.memory_space<vmem>>, vector<32x64xf32>
    %29 = arith.truncf %28 : vector<32x64xf32> to vector<32x64xbf16>
    %cst_12 = arith.constant dense<0.000000e+00> : vector<16x64xf32>
    %30 = tpu.matmul %27, %29, %cst_12 {dimension_numbers = #tpu.dot_dimension_numbers<[1], [0], [0], [1], [0, 0, 1, 1], [], []>} : vector<16x32xbf16>, vector<32x64xbf16>, vector<16x64xf32> -> vector<16x64xf32>
    %c0_13 = arith.constant 0 : index
    %c0_14 = arith.constant 0 : index
    %31 = vector.load %arg6[%c0_13, %c0_14] : memref<1x64xf32, #tpu.memory_space<vmem>>, vector<1x64xf32>
    %32 = vector.broadcast %31 : vector<1x64xf32> to vector<16x64xf32>
    %33 = arith.addf %30, %32 : vector<16x64xf32>
    %c0_15 = arith.constant 0 : index
    %c0_16 = arith.constant 0 : index
    %34 = vector.load %arg7[%c0_15, %c0_16] : memref<16x64xf32, #tpu.memory_space<vmem>>, vector<16x64xf32>
    tpu.vector_store %arg7[%c0_15, %c0_16], %33 {strides = array<i32>} : memref<16x64xf32, #tpu.memory_space<vmem>>, vector<16x64xf32>,
    return
  }
  func.func @transform_0(%arg0: i32, %arg1: i32) -> (i32, i32) {
    %c0_i32 = arith.constant 0 : i32
    %c0_i32_0 = arith.constant 0 : i32
    return %arg0, %c0_i32 : i32, i32
  }
  func.func @transform_1(%arg0: i32, %arg1: i32) -> (i32, i32) {
    %c0_i32 = arith.constant 0 : i32
    %c0_i32_0 = arith.constant 0 : i32
    %c0_i32_1 = arith.constant 0 : i32
    return %c0_i32, %c0_i32_0 : i32, i32
  }
  func.func @transform_2(%arg0: i32, %arg1: i32) -> (i32, i32) {
    %c0_i32 = arith.constant 0 : i32
    %c0_i32_0 = arith.constant 0 : i32
    %c0_i32_1 = arith.constant 0 : i32
    return %c0_i32, %c0_i32_0 : i32, i32
  }
  func.func @transform_3(%arg0: i32, %arg1: i32) -> (i32, i32) {
    %c0_i32 = arith.constant 0 : i32
    %c0_i32_0 = arith.constant 0 : i32
    return %c0_i32, %arg1 : i32, i32
  }
  func.func @transform_4(%arg0: i32, %arg1: i32) -> (i32, i32) {
    %c0_i32 = arith.constant 0 : i32
    %c0_i32_0 = arith.constant 0 : i32
    return %c0_i32, %arg1 : i32, i32
  }
  func.func @transform_5(%arg0: i32, %arg1: i32) -> (i32, i32) {
    %c0_i32 = arith.constant 0 : i32
    return %arg0, %arg1 : i32, i32
  }
}

</mosaic_0001>

<llo_original>
// kernel: transformer_forward.13
$region0: #{transformer_forward.13}
  #allocation0 [shape = 'u32[]', space=smem, size = 0x4, offset = 0x4, fixed_abs, tag = 'smem constant byte address 0x4 - core index']
  #allocation1 [shape = 'u32[144,128]{1,0:T(1,128)}', space=vmem, size = 0x12000, scoped, tag = 'internal scratch']
  #allocation2 [shape = 'f32[16,32]{1,0:T(8,128)}', space=vmem, size = 0x2000, scoped, tag = 'scratch operand']
  %s0 = inlined_call_operand.vmem [shape: f32[16,32], index: 0, kind: input, shape index: {}]
  %s1 = inlined_call_operand.vmem [shape: f32[32,32], index: 1, kind: input, shape index: {}]
  %s2 = inlined_call_operand.vmem [shape: f32[1,32], index: 2, kind: input, shape index: {}]
  %s3 = inlined_call_operand.vmem [shape: f32[16,32], index: 3, kind: output, shape index: {}]
  %s4 = sld [smem:[#allocation0]]
  $region30: #{transformer_forward.13} parent=0
    _
  %s6 = ssub.s32 1, %s4
  %s7 = scalar_select 0, %s6, %s4
  // Predicated region
  $region2: #{transformer_forward.13} parent=0 // pred_check
    _
  $region3: #{transformer_forward.13} parent=0 // pred_check_branch
    %9 = sbr.rel (0) target = $region5
  $region4: #{transformer_forward.13} parent=0 // pred_region
    _
  $region5: #{transformer_forward.13} parent=0 // pred_fallthru
    _
  // Predicated region
  $region6: #{transformer_forward.13} parent=0 // pred_check
    _
  $region7: #{transformer_forward.13} parent=0 // pred_check_branch
    %11 = sbr.rel (0) target = $region9
  $region8: #{transformer_forward.13} parent=0 // pred_region
    _
  $region9: #{transformer_forward.13} parent=0 // pred_fallthru
    _
  // Predicated region
  $region10: #{transformer_forward.13} parent=0 // pred_check
    _
  $region11: #{transformer_forward.13} parent=0 // pred_check_branch
    %13 = sbr.rel (0) target = $region13
  $region12: #{transformer_forward.13} parent=0 // pred_region
    _
  $region13: #{transformer_forward.13} parent=0 // pred_fallthru
    _
  %p15 = scmp.eq.s32.totalorder 0, 0
  // Predicated region
  $region14: #{transformer_forward.13} parent=0 // pred_check
    %p16 = pneg %p15
  $region15: #{transformer_forward.13} parent=0 // pred_check_branch
    %18 = sbr.rel (%p16) target = $region17
  $region16: #{transformer_forward.13} parent=0 // pred_region
    %vm19 = vcmask 261120
    %20 = vst.msk [vmem:[#allocation2] sm:$0xff] %vm19, 0.0
    %21 = vst.msk [vmem:[#allocation2 + $0x8] sm:$0xff] %vm19, 0.0
  $region17: #{transformer_forward.13} parent=0 // pred_fallthru
    _
  %v22 = vld [vmem:[#allocation2] sm:$0xff]
  %v23 = vld [vmem:[#allocation2 + $0x8] sm:$0xff]
  %v24 = vld [vmem:[%s0] sm:$0xff]
  %v25 = vld [vmem:[%s0 + $0x8] sm:$0xff]
  %v26 = vpack.c.bf16 %v25, %v24
  %v27 = vld [vmem:[%s1] sm:$0xff]
  %v28 = vld [vmem:[%s1 + $0x8] sm:$0xff]
  %v29 = vld [vmem:[%s1 + $0x10] sm:$0xff]
  %v30 = vld [vmem:[%s1 + $0x18] sm:$0xff]
  %v31 = vpack.c.bf16 %v28, %v27
  %v32 = vpack.c.bf16 %v30, %v29
  %vm33 = vcmask 261120
  %v35 = vsel %vm33, %v26, 0
  %37 = vmatprep.subr.bf16.mxu0 0
  %38 = vmatpush1.bf16.msra.mxu0 0
  %39 = vmatprep.subr.bf16.mxu0 0
  %40 = vmatpush1.bf16.msra.mxu0 0
  %41 = vmatprep.subr.bf16.mxu0 0
  %42 = vmatpush1.bf16.msra.mxu0 0
  %43 = vmatprep.subr.bf16.mxu0 0
  %44 = vmatpush1.bf16.msra.mxu0 0
  %45 = vmatprep.subr.bf16.mxu0 0
  %46 = vmatpush1.bf16.msra.mxu0 0
  %47 = vmatprep.subr.bf16.mxu0 0
  %48 = vmatpush1.bf16.msra.mxu0 0
  %49 = vmatprep.subr.bf16.mxu0 0
  %50 = vmatpush1.bf16.msra.mxu0 %v32
  %51 = vmatprep.subr.bf16.mxu0 0
  %52 = vmatpush1.bf16.msra.mxu0 %v31
  %53 = vmatprep.subr.bf16.mxu0 0
  %54 = vmatpush2.bf16.msra.mxu0 0
  %55 = vmatprep.subr.bf16.mxu0 0
  %56 = vmatpush2.bf16.msra.mxu0 0
  %57 = vmatprep.subr.bf16.mxu0 0
  %58 = vmatpush2.bf16.msra.mxu0 0
  %59 = vmatprep.subr.bf16.mxu0 0
  %60 = vmatpush2.bf16.msra.mxu0 0
  %61 = vmatprep.subr.bf16.mxu0 0
  %62 = vmatpush2.bf16.msra.mxu0 0
  %63 = vmatprep.subr.bf16.mxu0 0
  %64 = vmatpush2.bf16.msra.mxu0 0
  %65 = vmatprep.subr.bf16.mxu0 0
  %66 = vmatpush2.bf16.msra.mxu0 0
  %67 = vmatprep.subr.bf16.mxu0 0
  %68 = vmatpush2.bf16.msra.mxu0 0
  %69 = vmatprep.mubr.bf16.mxu0 0
  %70 = vmatmul.mubr.bf16.gmra.mxu0 %v35
  %v71 = vpop.f32.mrf.mxu0
  %v72 = vadd.f32 0.0, %v71
  %v73 = vpop.f32.mrf.mxu0
  %v74 = vpop.f32.mrf.mxu0
  %v75 = vadd.f32 0.0, %v74
  %v76 = vpop.f32.mrf.mxu0
  %77 = vdwg.mxu0
  %v78 = vadd.f32 %v22, %v72
  %v79 = vadd.f32 %v23, %v75
  %80 = vst.msk [vmem:[#allocation2] sm:$0xff] %vm33, %v78
  %81 = vst.msk [vmem:[#allocation2 + $0x8] sm:$0xff] %vm33, %v79
  // Predicated region
  $region18: #{transformer_forward.13} parent=0 // pred_check
    %p82 = pneg %p15
  $region19: #{transformer_forward.13} parent=0 // pred_check_branch
    %84 = sbr.rel (%p82) target = $region21
  $region20: #{transformer_forward.13} parent=0 // pred_region
    %v85 = vld [vmem:[#allocation2] sm:$0xff]
    %v86 = vld [vmem:[#allocation2 + $0x8] sm:$0xff]
    %v87 = vld [vmem:[%s2] sm:$0x1]
    %v89 = vlaneseq
    %v90 = vshrl.u32 %v89, 7
    %v91 = vsub.s32 0, %v90
    %v92 = vrot.slane %v87, %v91
    %v94 = vadd.f32 %v85, %v92
    %v95 = vadd.f32 %v86, %v92
    %96 = vst.msk [vmem:[%s3] sm:$0xff] %vm33, %v94
    %97 = vst.msk [vmem:[%s3 + $0x8] sm:$0xff] %vm33, %v95
  $region21: #{transformer_forward.13} parent=0 // pred_fallthru
    _
  // Predicated region
  $region22: #{transformer_forward.13} parent=0 // pred_check
    _
  $region23: #{transformer_forward.13} parent=0 // pred_check_branch
    %99 = sbr.rel (0) target = $region25
  $region24: #{transformer_forward.13} parent=0 // pred_region
    _
  $region25: #{transformer_forward.13} parent=0 // pred_fallthru
    _
  // Predicated region
  $region26: #{transformer_forward.13} parent=0 // pred_check
    _
  $region27: #{transformer_forward.13} parent=0 // pred_check_branch
    %101 = sbr.rel (0) target = $region29
  $region28: #{transformer_forward.13} parent=0 // pred_region
    _
  $region29: #{transformer_forward.13} parent=0 // pred_fallthru
    _

// kernel: transformer_forward.14
$region0: #{transformer_forward.14}
  #allocation0 [shape = 'u32[]', space=smem, size = 0x4, offset = 0x4, fixed_abs, tag = 'smem constant byte address 0x4 - core index']
  #allocation1 [shape = 'u32[144,128]{1,0:T(1,128)}', space=vmem, size = 0x12000, scoped, tag = 'internal scratch']
  %s0 = inlined_call_operand.vmem [shape: f32[16,32], index: 0, kind: input, shape index: {}]
  %s1 = inlined_call_operand.vmem [shape: f32[1,32], index: 1, kind: input, shape index: {}]
  %s2 = inlined_call_operand.vmem [shape: f32[1,32], index: 2, kind: input, shape index: {}]
  %s3 = inlined_call_operand.vmem [shape: f32[32,128], index: 3, kind: input, shape index: {}]
  %s4 = inlined_call_operand.vmem [shape: f32[1,128], index: 4, kind: input, shape index: {}]
  %s5 = inlined_call_operand.vmem [shape: f32[16,128], index: 5, kind: output, shape index: {}]
  %s6 = sld [smem:[#allocation0]]
  $region30: #{transformer_forward.14} parent=0
    _
  %s8 = ssub.s32 1, %s6
  %s9 = scalar_select 0, %s8, %s6
  // Predicated region
  $region2: #{transformer_forward.14} parent=0 // pred_check
    _
  $region3: #{transformer_forward.14} parent=0 // pred_check_branch
    %11 = sbr.rel (0) target = $region5
  $region4: #{transformer_forward.14} parent=0 // pred_region
    _
  $region5: #{transformer_forward.14} parent=0 // pred_fallthru
    _
  // Predicated region
  $region6: #{transformer_forward.14} parent=0 // pred_check
    _
  $region7: #{transformer_forward.14} parent=0 // pred_check_branch
    %13 = sbr.rel (0) target = $region9
  $region8: #{transformer_forward.14} parent=0 // pred_region
    _
  $region9: #{transformer_forward.14} parent=0 // pred_fallthru
    _
  // Predicated region
  $region10: #{transformer_forward.14} parent=0 // pred_check
    _
  $region11: #{transformer_forward.14} parent=0 // pred_check_branch
    %15 = sbr.rel (0) target = $region13
  $region12: #{transformer_forward.14} parent=0 // pred_region
    _
  $region13: #{transformer_forward.14} parent=0 // pred_fallthru
    _
  // Predicated region
  $region14: #{transformer_forward.14} parent=0 // pred_check
    _
  $region15: #{transformer_forward.14} parent=0 // pred_check_branch
    %17 = sbr.rel (0) target = $region17
  $region16: #{transformer_forward.14} parent=0 // pred_region
    _
  $region17: #{transformer_forward.14} parent=0 // pred_fallthru
    _
  // Predicated region
  $region18: #{transformer_forward.14} parent=0 // pred_check
    _
  $region19: #{transformer_forward.14} parent=0 // pred_check_branch
    %19 = sbr.rel (0) target = $region21
  $region20: #{transformer_forward.14} parent=0 // pred_region
    _
  $region21: #{transformer_forward.14} parent=0 // pred_fallthru
    _
  %v21 = vld [vmem:[%s0] sm:$0xff]
  %v22 = vld [vmem:[%s0 + $0x8] sm:$0xff]
  %vm23 = vcmask 261120
  %v24 = vsel %vm23, %v21, 0.0
  %25 = vadd.xlane.f32.xlu0 %v24
  %v26 = vpop.xlane.xlu0 %25
  %v27 = vsel %vm23, %v22, 0.0
  %28 = vadd.xlane.f32.xlu0 %v27
  %v29 = vpop.xlane.xlu0 %28
  %v30 = vrcp.pop 32.0
  %v31 = vmul.f32 %v26, %v30
  %v32 = vmul.f32 %v29, %v30
  %v33 = vsub.f32 %v21, %v31
  %v34 = vsub.f32 %v22, %v32
  %v35 = vmul.f32 %v33, %v33
  %v36 = vmul.f32 %v34, %v34
  %v37 = vsel %vm23, %v35, 0.0
  %38 = vadd.xlane.f32.xlu0 %v37
  %v39 = vpop.xlane.xlu0 %38
  %v40 = vsel %vm23, %v36, 0.0
  %41 = vadd.xlane.f32.xlu0 %v40
  %v42 = vpop.xlane.xlu0 %41
  %v43 = vmul.f32 %v39, %v30
  %v44 = vmul.f32 %v42, %v30
  %v45 = vadd.f32 %v43, 1e-05
  %v46 = vadd.f32 %v44, 1e-05
  %v47 = vrsqrt.pop %v45
  %v48 = vrsqrt.pop %v46
  %v49 = vmul.f32 %v33, %v47
  %v50 = vmul.f32 %v34, %v48
  %v51 = vld [vmem:[%s1] sm:$0x1]
  %v53 = vlaneseq
  %v54 = vshrl.u32 %v53, 7
  %v55 = vsub.s32 0, %v54
  %v56 = vrot.slane %v51, %v55
  %v58 = vmul.f32 %v49, %v56
  %v59 = vmul.f32 %v50, %v56
  %v60 = vld [vmem:[%s2] sm:$0x1]
  %v62 = vlaneseq
  %v63 = vshrl.u32 %v62, 7
  %v64 = vsub.s32 0, %v63
  %v65 = vrot.slane %v60, %v64
  %v67 = vadd.f32 %v58, %v65
  %v68 = vadd.f32 %v59, %v65
  %v69 = vpack.c.bf16 %v68, %v67
  %v70 = vld [vmem:[%s3] sm:$0xff]
  %v71 = vld [vmem:[%s3 + $0x8] sm:$0xff]
  %v72 = vld [vmem:[%s3 + $0x10] sm:$0xff]
  %v73 = vld [vmem:[%s3 + $0x18] sm:$0xff]
  %v74 = vpack.c.bf16 %v71, %v70
  %v75 = vpack.c.bf16 %v73, %v72
  %v76 = vld [vmem:[%s4] sm:$0x1]
  %v78 = vlaneseq
  %v79 = vshrl.u32 %v78, 7
  %v80 = vsub.s32 0, %v79
  %v81 = vrot.slane %v76, %v80
  %v84 = vsel %vm23, %v69, 0
  %86 = vmatprep.subr.bf16.mxu0 0
  %87 = vmatpush1.bf16.msra.mxu0 0
  %88 = vmatprep.subr.bf16.mxu0 0
  %89 = vmatpush1.bf16.msra.mxu0 0
  %90 = vmatprep.subr.bf16.mxu0 0
  %91 = vmatpush1.bf16.msra.mxu0 0
  %92 = vmatprep.subr.bf16.mxu0 0
  %93 = vmatpush1.bf16.msra.mxu0 0
  %94 = vmatprep.subr.bf16.mxu0 0
  %95 = vmatpush1.bf16.msra.mxu0 0
  %96 = vmatprep.subr.bf16.mxu0 0
  %97 = vmatpush1.bf16.msra.mxu0 0
  %98 = vmatprep.subr.bf16.mxu0 0
  %99 = vmatpush1.bf16.msra.mxu0 %v75
  %100 = vmatprep.subr.bf16.mxu0 0
  %101 = vmatpush1.bf16.msra.mxu0 %v74
  %102 = vmatprep.subr.bf16.mxu0 0
  %103 = vmatpush2.bf16.msra.mxu0 0
  %104 = vmatprep.subr.bf16.mxu0 0
  %105 = vmatpush2.bf16.msra.mxu0 0
  %106 = vmatprep.subr.bf16.mxu0 0
  %107 = vmatpush2.bf16.msra.mxu0 0
  %108 = vmatprep.subr.bf16.mxu0 0
  %109 = vmatpush2.bf16.msra.mxu0 0
  %110 = vmatprep.subr.bf16.mxu0 0
  %111 = vmatpush2.bf16.msra.mxu0 0
  %112 = vmatprep.subr.bf16.mxu0 0
  %113 = vmatpush2.bf16.msra.mxu0 0
  %114 = vmatprep.subr.bf16.mxu0 0
  %115 = vmatpush2.bf16.msra.mxu0 0
  %116 = vmatprep.subr.bf16.mxu0 0
  %117 = vmatpush2.bf16.msra.mxu0 0
  %118 = vmatprep.mubr.bf16.mxu0 0
  %119 = vmatmul.mubr.bf16.gmra.mxu0 %v84
  %v120 = vpop.f32.mrf.mxu0
  %v121 = vadd.f32 %v81, %v120
  %v122 = vpop.f32.mrf.mxu0
  %v123 = vpop.f32.mrf.mxu0
  %v124 = vadd.f32 %v81, %v123
  %v125 = vpop.f32.mrf.mxu0
  %126 = vdwg.mxu0
  %v127 = vmax.f32 %v121, 0.0
  %v128 = vmax.f32 %v124, 0.0
  %v129 = vmul.f32 %v127, %v127
  %v130 = vmul.f32 %v128, %v128
  %131 = vst [vmem:[%s5] sm:$0xff] %v129
  %132 = vst [vmem:[%s5 + $0x8] sm:$0xff] %v130
  // Predicated region
  $region22: #{transformer_forward.14} parent=0 // pred_check
    _
  $region23: #{transformer_forward.14} parent=0 // pred_check_branch
    %134 = sbr.rel (0) target = $region25
  $region24: #{transformer_forward.14} parent=0 // pred_region
    _
  $region25: #{transformer_forward.14} parent=0 // pred_fallthru
    _
  // Predicated region
  $region26: #{transformer_forward.14} parent=0 // pred_check
    _
  $region27: #{transformer_forward.14} parent=0 // pred_check_branch
    %136 = sbr.rel (0) target = $region29
  $region28: #{transformer_forward.14} parent=0 // pred_region
    _
  $region29: #{transformer_forward.14} parent=0 // pred_fallthru
    _

// kernel: transformer_forward.11
$region0: #{transformer_forward.11}
  #allocation0 [shape = 'u32[]', space=smem, size = 0x4, offset = 0x4, fixed_abs, tag = 'smem constant byte address 0x4 - core index']
  #allocation1 [shape = 'u32[144,128]{1,0:T(1,128)}', space=vmem, size = 0x12000, scoped, tag = 'internal scratch']
  %s0 = inlined_call_operand.vmem [shape: f32[16,32], index: 0, kind: input, shape index: {}]
  %s1 = inlined_call_operand.vmem [shape: f32[1,32], index: 1, kind: input, shape index: {}]
  %s2 = inlined_call_operand.vmem [shape: f32[1,32], index: 2, kind: input, shape index: {}]
  %s3 = inlined_call_operand.vmem [shape: f32[32,96], index: 3, kind: input, shape index: {}]
  %s4 = inlined_call_operand.vmem [shape: f32[16,96], index: 4, kind: output, shape index: {}]
  %s5 = sld [smem:[#allocation0]]
  $region26: #{transformer_forward.11} parent=0
    _
  %s7 = ssub.s32 1, %s5
  %s8 = scalar_select 0, %s7, %s5
  // Predicated region
  $region2: #{transformer_forward.11} parent=0 // pred_check
    _
  $region3: #{transformer_forward.11} parent=0 // pred_check_branch
    %10 = sbr.rel (0) target = $region5
  $region4: #{transformer_forward.11} parent=0 // pred_region
    _
  $region5: #{transformer_forward.11} parent=0 // pred_fallthru
    _
  // Predicated region
  $region6: #{transformer_forward.11} parent=0 // pred_check
    _
  $region7: #{transformer_forward.11} parent=0 // pred_check_branch
    %12 = sbr.rel (0) target = $region9
  $region8: #{transformer_forward.11} parent=0 // pred_region
    _
  $region9: #{transformer_forward.11} parent=0 // pred_fallthru
    _
  // Predicated region
  $region10: #{transformer_forward.11} parent=0 // pred_check
    _
  $region11: #{transformer_forward.11} parent=0 // pred_check_branch
    %14 = sbr.rel (0) target = $region13
  $region12: #{transformer_forward.11} parent=0 // pred_region
    _
  $region13: #{transformer_forward.11} parent=0 // pred_fallthru
    _
  // Predicated region
  $region14: #{transformer_forward.11} parent=0 // pred_check
    _
  $region15: #{transformer_forward.11} parent=0 // pred_check_branch
    %16 = sbr.rel (0) target = $region17
  $region16: #{transformer_forward.11} parent=0 // pred_region
    _
  $region17: #{transformer_forward.11} parent=0 // pred_fallthru
    _
  %v18 = vld [vmem:[%s0] sm:$0xff]
  %v19 = vld [vmem:[%s0 + $0x8] sm:$0xff]
  %vm20 = vcmask 261120
  %v21 = vsel %vm20, %v18, 0.0
  %22 = vadd.xlane.f32.xlu0 %v21
  %v23 = vpop.xlane.xlu0 %22
  %v24 = vsel %vm20, %v19, 0.0
  %25 = vadd.xlane.f32.xlu0 %v24
  %v26 = vpop.xlane.xlu0 %25
  %v27 = vrcp.pop 32.0
  %v28 = vmul.f32 %v23, %v27
  %v29 = vmul.f32 %v26, %v27
  %v30 = vsub.f32 %v18, %v28
  %v31 = vsub.f32 %v19, %v29
  %v32 = vmul.f32 %v30, %v30
  %v33 = vmul.f32 %v31, %v31
  %v34 = vsel %vm20, %v32, 0.0
  %35 = vadd.xlane.f32.xlu0 %v34
  %v36 = vpop.xlane.xlu0 %35
  %v37 = vsel %vm20, %v33, 0.0
  %38 = vadd.xlane.f32.xlu0 %v37
  %v39 = vpop.xlane.xlu0 %38
  %v40 = vmul.f32 %v36, %v27
  %v41 = vmul.f32 %v39, %v27
  %v42 = vadd.f32 %v40, 1e-05
  %v43 = vadd.f32 %v41, 1e-05
  %v44 = vrsqrt.pop %v42
  %v45 = vrsqrt.pop %v43
  %v46 = vmul.f32 %v30, %v44
  %v47 = vmul.f32 %v31, %v45
  %v48 = vld [vmem:[%s1] sm:$0x1]
  %v50 = vlaneseq
  %v51 = vshrl.u32 %v50, 7
  %v52 = vsub.s32 0, %v51
  %v53 = vrot.slane %v48, %v52
  %v55 = vmul.f32 %v46, %v53
  %v56 = vmul.f32 %v47, %v53
  %v57 = vld [vmem:[%s2] sm:$0x1]
  %v59 = vlaneseq
  %v60 = vshrl.u32 %v59, 7
  %v61 = vsub.s32 0, %v60
  %v62 = vrot.slane %v57, %v61
  %v64 = vadd.f32 %v55, %v62
  %v65 = vadd.f32 %v56, %v62
  %v66 = vpack.c.bf16 %v65, %v64
  %v67 = vld [vmem:[%s3] sm:$0xff]
  %v68 = vld [vmem:[%s3 + $0x8] sm:$0xff]
  %v69 = vld [vmem:[%s3 + $0x10] sm:$0xff]
  %v70 = vld [vmem:[%s3 + $0x18] sm:$0xff]
  %v71 = vpack.c.bf16 %v68, %v67
  %v72 = vpack.c.bf16 %v70, %v69
  %v74 = vsel %vm20, %v66, 0
  %76 = vmatprep.subr.bf16.mxu0 0
  %77 = vmatpush1.bf16.msra.mxu0 0
  %78 = vmatprep.subr.bf16.mxu0 0
  %79 = vmatpush1.bf16.msra.mxu0 0
  %80 = vmatprep.subr.bf16.mxu0 0
  %81 = vmatpush1.bf16.msra.mxu0 0
  %82 = vmatprep.subr.bf16.mxu0 0
  %83 = vmatpush1.bf16.msra.mxu0 0
  %84 = vmatprep.subr.bf16.mxu0 0
  %85 = vmatpush1.bf16.msra.mxu0 0
  %86 = vmatprep.subr.bf16.mxu0 0
  %87 = vmatpush1.bf16.msra.mxu0 0
  %88 = vmatprep.subr.bf16.mxu0 0
  %89 = vmatpush1.bf16.msra.mxu0 %v72
  %90 = vmatprep.subr.bf16.mxu0 0
  %91 = vmatpush1.bf16.msra.mxu0 %v71
  %92 = vmatprep.subr.bf16.mxu0 0
  %93 = vmatpush2.bf16.msra.mxu0 0
  %94 = vmatprep.subr.bf16.mxu0 0
  %95 = vmatpush2.bf16.msra.mxu0 0
  %96 = vmatprep.subr.bf16.mxu0 0
  %97 = vmatpush2.bf16.msra.mxu0 0
  %98 = vmatprep.subr.bf16.mxu0 0
  %99 = vmatpush2.bf16.msra.mxu0 0
  %100 = vmatprep.subr.bf16.mxu0 0
  %101 = vmatpush2.bf16.msra.mxu0 0
  %102 = vmatprep.subr.bf16.mxu0 0
  %103 = vmatpush2.bf16.msra.mxu0 0
  %104 = vmatprep.subr.bf16.mxu0 0
  %105 = vmatpush2.bf16.msra.mxu0 0
  %106 = vmatprep.subr.bf16.mxu0 0
  %107 = vmatpush2.bf16.msra.mxu0 0
  %108 = vmatprep.mubr.bf16.mxu0 0
  %109 = vmatmul.mubr.bf16.gmra.mxu0 %v74
  %v110 = vpop.f32.mrf.mxu0
  %v111 = vadd.f32 0.0, %v110
  %v112 = vpop.f32.mrf.mxu0
  %v113 = vpop.f32.mrf.mxu0
  %v114 = vadd.f32 0.0, %v113
  %v115 = vpop.f32.mrf.mxu0
  %116 = vdwg.mxu0
  %vm117 = vcmask 785408
  %118 = vst.msk [vmem:[%s4] sm:$0xff] %vm117, %v111
  %119 = vst.msk [vmem:[%s4 + $0x8] sm:$0xff] %vm117, %v114
  // Predicated region
  $region18: #{transformer_forward.11} parent=0 // pred_check
    _
  $region19: #{transformer_forward.11} parent=0 // pred_check_branch
    %121 = sbr.rel (0) target = $region21
  $region20: #{transformer_forward.11} parent=0 // pred_region
    _
  $region21: #{transformer_forward.11} parent=0 // pred_fallthru
    _
  // Predicated region
  $region22: #{transformer_forward.11} parent=0 // pred_check
    _
  $region23: #{transformer_forward.11} parent=0 // pred_check_branch
    %123 = sbr.rel (0) target = $region25
  $region24: #{transformer_forward.11} parent=0 // pred_region
    _
  $region25: #{transformer_forward.11} parent=0 // pred_fallthru
    _

// kernel: transformer_forward.12
$region0: #{transformer_forward.12}
  #allocation0 [shape = 'u32[]', space=smem, size = 0x4, offset = 0x4, fixed_abs, tag = 'smem constant byte address 0x4 - core index']
  #allocation1 [shape = 'u32[144,128]{1,0:T(1,128)}', space=vmem, size = 0x12000, scoped, tag = 'internal scratch']
  #allocation2 [shape = 'f32[8,1]{1,0:T(8,128)}', space=vmem, size = 0x1000, scoped, tag = 'scratch operand']
  #allocation3 [shape = 'f32[8,1]{1,0:T(8,128)}', space=vmem, size = 0x1000, scoped, tag = 'scratch operand']
  #allocation4 [shape = 'f32[8,16]{1,0:T(8,128)}', space=vmem, size = 0x1000, scoped, tag = 'scratch operand']
  %s0 = inlined_call_operand.vmem [shape: f32[4,8,16], index: 0, kind: input, shape index: {}]
  %s1 = inlined_call_operand.vmem [shape: f32[4,8,16], index: 1, kind: input, shape index: {}]
  %s2 = inlined_call_operand.vmem [shape: f32[4,8,16], index: 2, kind: input, shape index: {}]
  %s3 = inlined_call_operand.vmem [shape: f32[4,8,16], index: 3, kind: output, shape index: {}]
  %s4 = sld [smem:[#allocation0]]
  $region57: #{transformer_forward.12} parent=0
    _
  %s6 = ssub.s32 1, %s4
  %s7 = scalar_select 0, %s6, %s4
  loop: start=0, step=1, limit=6
  $region2: #{transformer_forward.12} parent=0 // loop_pre_header
    _
  $region3: #{transformer_forward.12} parent=0 // loop_header
    %s9 = sphi 0, %s13
    %p10 = scmp.ge.s32.totalorder %s9, 6
    %s16 = sphi 0, %s35
    %s17 = sphi 0, %s31
    %s18 = sphi 0, %s27
    %s19 = sphi 0, %s16
    %s20 = sphi 0, %s17
    %s21 = sphi 0, %s18
    %s22 = sphi 0, %s19
    %s23 = sphi 0, %s20
    %s24 = sphi 0, %s21
    %s40 = sphi 0, %s42
    %s43 = sphi 0, %s40
    %s44 = sphi 0, %s43
    %s60 = sphi 0, %s44
    %s68 = sphi 0, %s70
    %s71 = sphi 0, %s68
    %s72 = sphi 0, %s71
    %s88 = sphi 0, %s72
    %s96 = sphi 0, %s98
    %s99 = sphi 0, %s96
    %s100 = sphi 0, %s99
    %s116 = sphi 0, %s100
    %s124 = sphi 0, %s126
    %s127 = sphi 0, %s124
    %s128 = sphi 0, %s127
    %s144 = sphi 0, %s128
  $region4: #{transformer_forward.12} parent=0 // loop_header_branch
    %12 = sbr.rel (%p10) target = $region8
  $region5: #{transformer_forward.12} parent=0 // loop_body
    %s14 = ssub.s32 %s9, 1
    %s15 = ssub.s32 %s9, 2
    %s25 = sadd.s32 1, %s18
    %p26 = scmp.ge.s32.totalorder %s25, 1
    %s27 = scalar_select %p26, 0, %s25
    %s28 = sadd.s32 1, %s17
    %s29 = scalar_select %p26, %s28, %s17
    %p30 = scmp.ge.s32.totalorder %s29, 1
    %s31 = scalar_select %p30, 0, %s29
    %s32 = sadd.s32 1, %s16
    %s33 = scalar_select %p30, %s32, %s16
    %p34 = scmp.ge.s32.totalorder %s33, 4
    %s35 = scalar_select %p34, 0, %s33
    %s36 = ssub.s32 %s16, %s35
    %s37 = ssub.s32 %s17, %s31
    %s38 = sor.u32 %s36, %s37
    %p39 = scmp.eq.s32.totalorder %s38, 0
    %s41 = sadd.s32 %s40, 1
    %s42 = scalar_select %p39, %s40, %s41
    %p45 = pneg %p39
    %p46 = scmp.eq.s32.totalorder %s9, 3
    %p47 = por %p45, %p46
    %p48 = scmp.ne.s32.totalorder %s40, %s43
    %p49 = scmp.eq.s32.totalorder %s9, 0
    %p50 = por %p48, %p49
    %p51 = scmp.ne.s32.totalorder %s40, %s43
    %p52 = scmp.eq.s32.totalorder %s14, 3
    %p53 = por %p51, %p52
    %p54 = scmp.ne.s32.totalorder %s43, %s44
    %p55 = scmp.eq.s32.totalorder %s14, 0
    %p56 = por %p54, %p55
    %p57 = scmp.ne.s32.totalorder %s43, %s44
    %p58 = scmp.eq.s32.totalorder %s15, 3
    %p59 = por %p57, %p58
    %p61 = scmp.ne.s32.totalorder %s44, %s60
    %p62 = scmp.eq.s32.totalorder %s15, 0
    %p63 = por %p61, %p62
    %s64 = ssub.s32 %s16, %s35
    %s65 = ssub.s32 %s18, %s27
    %s66 = sor.u32 %s64, %s65
    %p67 = scmp.eq.s32.totalorder %s66, 0
    %s69 = sadd.s32 %s68, 1
    %s70 = scalar_select %p67, %s68, %s69
    %p73 = pneg %p67
    %p74 = scmp.eq.s32.totalorder %s9, 3
    %p75 = por %p73, %p74
    %p76 = scmp.ne.s32.totalorder %s68, %s71
    %p77 = scmp.eq.s32.totalorder %s9, 0
    %p78 = por %p76, %p77
    %p79 = scmp.ne.s32.totalorder %s68, %s71
    %p80 = scmp.eq.s32.totalorder %s14, 3
    %p81 = por %p79, %p80
    %p82 = scmp.ne.s32.totalorder %s71, %s72
    %p83 = scmp.eq.s32.totalorder %s14, 0
    %p84 = por %p82, %p83
    %p85 = scmp.ne.s32.totalorder %s71, %s72
    %p86 = scmp.eq.s32.totalorder %s15, 3
    %p87 = por %p85, %p86
    %p89 = scmp.ne.s32.totalorder %s72, %s88
    %p90 = scmp.eq.s32.totalorder %s15, 0
    %p91 = por %p89, %p90
    %s92 = ssub.s32 %s16, %s35
    %s93 = ssub.s32 %s18, %s27
    %s94 = sor.u32 %s92, %s93
    %p95 = scmp.eq.s32.totalorder %s94, 0
    %s97 = sadd.s32 %s96, 1
    %s98 = scalar_select %p95, %s96, %s97
    %p101 = pneg %p95
    %p102 = scmp.eq.s32.totalorder %s9, 3
    %p103 = por %p101, %p102
    %p104 = scmp.ne.s32.totalorder %s96, %s99
    %p105 = scmp.eq.s32.totalorder %s9, 0
    %p106 = por %p104, %p105
    %p107 = scmp.ne.s32.totalorder %s96, %s99
    %p108 = scmp.eq.s32.totalorder %s14, 3
    %p109 = por %p107, %p108
    %p110 = scmp.ne.s32.totalorder %s99, %s100
    %p111 = scmp.eq.s32.totalorder %s14, 0
    %p112 = por %p110, %p111
    %p113 = scmp.ne.s32.totalorder %s99, %s100
    %p114 = scmp.eq.s32.totalorder %s15, 3
    %p115 = por %p113, %p114
    %p117 = scmp.ne.s32.totalorder %s100, %s116
    %p118 = scmp.eq.s32.totalorder %s15, 0
    %p119 = por %p117, %p118
    %s120 = ssub.s32 %s16, %s35
    %s121 = ssub.s32 %s17, %s31
    %s122 = sor.u32 %s120, %s121
    %p123 = scmp.eq.s32.totalorder %s122, 0
    %s125 = sadd.s32 %s124, 1
    %s126 = scalar_select %p123, %s124, %s125
    %p129 = pneg %p123
    %p130 = scmp.eq.s32.totalorder %s9, 3
    %p131 = por %p129, %p130
    %p132 = scmp.ne.s32.totalorder %s124, %s127
    %p133 = scmp.eq.s32.totalorder %s9, 0
    %p134 = por %p132, %p133
    %p135 = scmp.ne.s32.totalorder %s124, %s127
    %p136 = scmp.eq.s32.totalorder %s14, 3
    %p137 = por %p135, %p136
    %p138 = scmp.ne.s32.totalorder %s127, %s128
    %p139 = scmp.eq.s32.totalorder %s14, 0
    %p140 = por %p138, %p139
    %p141 = scmp.ne.s32.totalorder %s127, %s128
    %p142 = scmp.eq.s32.totalorder %s15, 3
    %p143 = por %p141, %p142
    %p145 = scmp.ne.s32.totalorder %s128, %s144
    %p146 = scmp.eq.s32.totalorder %s15, 0
    %p147 = por %p145, %p146
    %p148 = scmp.le.s32.totalorder 1, %s9
    %p149 = scmp.lt.s32.totalorder %s9, 5
    %p150 = pnand %p148, %p149
    %p151 = pneg %p150
    // Predicated region
    $region9: #{transformer_forward.12} parent=5 // pred_check
      _
    $region10: #{transformer_forward.12} parent=5 // pred_check_branch
      %153 = sbr.rel (%p150) target = $region12
    $region11: #{transformer_forward.12} parent=5 // pred_region
      %s154 = ssub.s32 %s9, 1
    $region12: #{transformer_forward.12} parent=5 // pred_fallthru
      _
    %p155 = scmp.lt.s32.totalorder %s9, 4
    // Predicated region
    $region13: #{transformer_forward.12} parent=5 // pred_check
      %p156 = pneg %p155
    $region14: #{transformer_forward.12} parent=5 // pred_check_branch
      %158 = sbr.rel (%p156) target = $region16
    $region15: #{transformer_forward.12} parent=5 // pred_region
      // Predicated region
      $region17: #{transformer_forward.12} parent=15 // pred_check
        %p159 = pneg %p50
      $region18: #{transformer_forward.12} parent=15 // pred_check_branch
        %161 = sbr.rel (%p159) target = $region20
      $region19: #{transformer_forward.12} parent=15 // pred_region
        %p162 = scmp.lt.s32.totalorder %s16, 3
        %s163 = scalar_select %p162, %s16, 3
        %p164 = scmp.lt.s32.totalorder %s17, 0
        %s165 = scalar_select %p164, %s17, 0
        %s166 = sadd.s32 %s165, %s163
        %s167 = smul.addr %s166, 8
        %s168 = scalar_lea.vmem %s0, %s167
      $region20: #{transformer_forward.12} parent=15 // pred_fallthru
        _
      // Predicated region
      $region21: #{transformer_forward.12} parent=15 // pred_check
        %p169 = pneg %p78
      $region22: #{transformer_forward.12} parent=15 // pred_check_branch
        %171 = sbr.rel (%p169) target = $region24
      $region23: #{transformer_forward.12} parent=15 // pred_region
        %p172 = scmp.lt.s32.totalorder %s16, 3
        %s173 = scalar_select %p172, %s16, 3
        %p174 = scmp.lt.s32.totalorder %s18, 0
        %s175 = scalar_select %p174, %s18, 0
        %s176 = sadd.s32 %s175, %s173
        %s177 = smul.addr %s176, 8
        %s178 = scalar_lea.vmem %s1, %s177
      $region24: #{transformer_forward.12} parent=15 // pred_fallthru
        _
      // Predicated region
      $region25: #{transformer_forward.12} parent=15 // pred_check
        %p179 = pneg %p106
      $region26: #{transformer_forward.12} parent=15 // pred_check_branch
        %181 = sbr.rel (%p179) target = $region28
      $region27: #{transformer_forward.12} parent=15 // pred_region
        %p182 = scmp.lt.s32.totalorder %s16, 3
        %s183 = scalar_select %p182, %s16, 3
        %p184 = scmp.lt.s32.totalorder %s18, 0
        %s185 = scalar_select %p184, %s18, 0
        %s186 = sadd.s32 %s185, %s183
        %s187 = smul.addr %s186, 8
        %s188 = scalar_lea.vmem %s2, %s187
      $region28: #{transformer_forward.12} parent=15 // pred_fallthru
        _
    $region16: #{transformer_forward.12} parent=5 // pred_fallthru
      _
    %p189 = scmp.le.s32.totalorder 1, %s9
    %p190 = scmp.lt.s32.totalorder %s9, 5
    %p191 = pnand %p189, %p190
    %p192 = pneg %p191
    // Predicated region
    $region29: #{transformer_forward.12} parent=5 // pred_check
      _
    $region30: #{transformer_forward.12} parent=5 // pred_check_branch
      %194 = sbr.rel (%p191) target = $region32
    $region31: #{transformer_forward.12} parent=5 // pred_region
      %s195 = ssub.s32 %s9, 1
      %p196 = scmp.lt.s32.totalorder %s19, 3
      %s197 = scalar_select %p196, %s19, 3
      %p198 = scmp.lt.s32.totalorder %s20, 0
      %s199 = scalar_select %p198, %s20, 0
      %s200 = sadd.s32 %s199, %s197
      %s201 = smul.addr %s200, 8
      %s202 = scalar_lea.vmem %s0, %s201
      %p203 = pneg %p56
      %p204 = pneg %p53
      %p205 = scmp.lt.s32.totalorder %s19, 3
      %s206 = scalar_select %p205, %s19, 3
      %p207 = scmp.lt.s32.totalorder %s21, 0
      %s208 = scalar_select %p207, %s21, 0
      %s209 = sadd.s32 %s208, %s206
      %s210 = smul.addr %s209, 8
      %s211 = scalar_lea.vmem %s1, %s210
      %p212 = pneg %p84
      %p213 = pneg %p81
      %p214 = scmp.lt.s32.totalorder %s19, 3
      %s215 = scalar_select %p214, %s19, 3
      %p216 = scmp.lt.s32.totalorder %s21, 0
      %s217 = scalar_select %p216, %s21, 0
      %s218 = sadd.s32 %s217, %s215
      %s219 = smul.addr %s218, 8
      %s220 = scalar_lea.vmem %s2, %s219
      %p221 = pneg %p112
      %p222 = pneg %p109
      %p223 = pneg %p140
      %p224 = pneg %p137
      %p225 = scmp.lt.s32.totalorder %s19, 3
      %s226 = scalar_select %p225, %s19, 3
      %p227 = scmp.lt.s32.totalorder %s20, 0
      %s228 = scalar_select %p227, %s20, 0
      %s229 = sadd.s32 %s228, %s226
      %s230 = smul.addr %s229, 8
      %s231 = scalar_lea.vmem %s3, %s230
      %p232 = scmp.lt.s32.totalorder %s19, 3
      %s233 = scalar_select %p232, %s19, 3
      %p234 = scmp.lt.s32.totalorder %s20, 0
      %s235 = scalar_select %p234, %s20, 0
      %s236 = sadd.s32 %s235, %s233
      %s237 = smul.addr %s236, 8
      %s238 = scalar_lea.vmem %s0, %s237
      %p239 = scmp.lt.s32.totalorder %s19, 3
      %s240 = scalar_select %p239, %s19, 3
      %p241 = scmp.lt.s32.totalorder %s21, 0
      %s242 = scalar_select %p241, %s21, 0
      %s243 = sadd.s32 %s242, %s240
      %s244 = smul.addr %s243, 8
      %s245 = scalar_lea.vmem %s1, %s244
      %p246 = scmp.lt.s32.totalorder %s19, 3
      %s247 = scalar_select %p246, %s19, 3
      %p248 = scmp.lt.s32.totalorder %s21, 0
      %s249 = scalar_select %p248, %s21, 0
      %s250 = sadd.s32 %s249, %s247
      %s251 = smul.addr %s250, 8
      %s252 = scalar_lea.vmem %s2, %s251
      %p253 = scmp.lt.s32.totalorder %s19, 3
      %s254 = scalar_select %p253, %s19, 3
      %p255 = scmp.lt.s32.totalorder %s20, 0
      %s256 = scalar_select %p255, %s20, 0
      %s257 = sadd.s32 %s256, %s254
      %s258 = smul.addr %s257, 8
      %s259 = scalar_lea.vmem %s3, %s258
      %p261 = scmp.eq.s32.totalorder %s21, 0
      // Predicated region
      $region33: #{transformer_forward.12} parent=31 // pred_check
        %p262 = pneg %p261
      $region34: #{transformer_forward.12} parent=31 // pred_check_branch
        %264 = sbr.rel (%p262) target = $region36
      $region35: #{transformer_forward.12} parent=31 // pred_region
        %vm265 = vcmask 7168
        %266 = vst.msk [vmem:[#allocation2] sm:$0xff] %vm265, -inf
        %267 = vst.msk [vmem:[#allocation3] sm:$0xff] %vm265, 0.0
        %vm268 = vcmask 130048
        %269 = vst.msk [vmem:[#allocation4] sm:$0xff] %vm268, 0.0
      $region36: #{transformer_forward.12} parent=31 // pred_fallthru
        _
      %s270 = smul.u32 %s21, 8
      %s271 = smul.u32 %s20, 8
      %s272 = sadd.s32 %s271, 7
      %p273 = scmp.le.s32.totalorder %s270, %s272
      // Predicated region
      $region37: #{transformer_forward.12} parent=31 // pred_check
        %p274 = pneg %p273
      $region38: #{transformer_forward.12} parent=31 // pred_check_branch
        %276 = sbr.rel (%p274) target = $region40
      $region39: #{transformer_forward.12} parent=31 // pred_region
        %v277 = vld [vmem:[%s238] sm:$0xff]
        %v278 = vmul.f32 %v277, 0.25
        %v279 = vpack.c.bf16 %v278, %v278
        %v280 = vld [vmem:[%s245] sm:$0xff]
        %v281 = vpack.c.bf16 %v280, %v280
        %vm282 = vcmask 130048
        %v284 = vsel %vm282, %v279, 0
        %v287 = vsel %vm282, %v281, 0
        %289 = vmatprep.subr.bf16.mxu0 0
        %290 = vmatpush1.bf16.xpose.msra.mxu0 0
        %291 = vmatprep.subr.bf16.mxu0 0
        %292 = vmatpush1.bf16.xpose.msra.mxu0 0
        %293 = vmatprep.subr.bf16.mxu0 0
        %294 = vmatpush1.bf16.xpose.msra.mxu0 0
        %295 = vmatprep.subr.bf16.mxu0 0
        %296 = vmatpush1.bf16.xpose.msra.mxu0 0
        %297 = vmatprep.subr.bf16.mxu0 0
        %298 = vmatpush1.bf16.xpose.msra.mxu0 0
        %299 = vmatprep.subr.bf16.mxu0 0
        %300 = vmatpush1.bf16.xpose.msra.mxu0 0
        %301 = vmatprep.subr.bf16.mxu0 0
        %302 = vmatpush1.bf16.xpose.msra.mxu0 0
        %303 = vmatprep.subr.bf16.mxu0 0
        %304 = vmatpush1.bf16.xpose.msra.mxu0 %v287
        %305 = vmatprep.subr.bf16.mxu0 0
        %306 = vmatpush2.bf16.xpose.msra.mxu0 0
        %307 = vmatprep.subr.bf16.mxu0 0
        %308 = vmatpush2.bf16.xpose.msra.mxu0 0
        %309 = vmatprep.subr.bf16.mxu0 0
        %310 = vmatpush2.bf16.xpose.msra.mxu0 0
        %311 = vmatprep.subr.bf16.mxu0 0
        %312 = vmatpush2.bf16.xpose.msra.mxu0 0
        %313 = vmatprep.subr.bf16.mxu0 0
        %314 = vmatpush2.bf16.xpose.msra.mxu0 0
        %315 = vmatprep.subr.bf16.mxu0 0
        %316 = vmatpush2.bf16.xpose.msra.mxu0 0
        %317 = vmatprep.subr.bf16.mxu0 0
        %318 = vmatpush2.bf16.xpose.msra.mxu0 0
        %319 = vmatprep.subr.bf16.mxu0 0
        %320 = vmatpush2.bf16.xpose.msra.mxu0 0
        %321 = vmatprep.mubr.bf16.mxu0 0
        %322 = vmatmul.mubr.bf16.gmra.mxu0 %v284
        %v323 = vpop.f32.mrf.mxu0
        %v324 = vadd.f32 0.0, %v323
        %v325 = vpop.f32.mrf.mxu0
        %v326 = vpop.f32.mrf.mxu0
        %v327 = vpop.f32.mrf.mxu0
        %328 = vdwg.mxu0
        %v329 = vlaneseq
        %v330 = vand.u32 %v329, 127
        %v331 = vstv %s270
        %v332 = vadd.s32 %v331, %v330
        %v333 = vlaneseq
        %v334 = vshrl.u32 %v333, 7
        %v335 = vstv %s271
        %v336 = vadd.s32 %v335, %v334
        %vm337 = vcmp.gt.s32.totalorder %v332, %v336
        %v338 = vsel %vm337, -1e+30, %v324
        %v339 = vld [vmem:[#allocation2] sm:$0xff]
        %vm340 = vcmask 64512
        %v341 = vsel %vm340, %v338, -inf
        %342 = vmax.xlane.f32.xlu0 %v341
        %v343 = vpop.xlane.xlu0 %342
        %v344 = vmax.f32 %v339, %v343
        %v345 = vsub.f32 %v339, %v344
        %v346 = vmul.f32 %v345, 1.442695
        %v347 = vpow.pop %v346
        %349 = vset.pattern.permute.xlu0 0
        %350 = vperm.xlu0 %349, %v344
        %v351 = vpop.permute.xlu0 %350
        %v353 = vsub.f32 %v338, %v351
        %v354 = vmul.f32 %v353, 1.442695
        %v355 = vpow.pop %v354
        %v356 = vld [vmem:[#allocation3] sm:$0xff]
        %v357 = vmul.f32 %v347, %v356
        %v358 = vsel %vm340, %v355, 0.0
        %359 = vadd.xlane.f32.xlu0 %v358
        %v360 = vpop.xlane.xlu0 %359
        %v361 = vadd.f32 %v357, %v360
        %vm362 = vcmask 7168
        %363 = vst.msk [vmem:[#allocation3] sm:$0xff] %vm362, %v361
        %v364 = vld [vmem:[#allocation4] sm:$0xff]
        %366 = vset.pattern.permute.xlu0 0
        %367 = vperm.xlu0 %366, %v347
        %v368 = vpop.permute.xlu0 %367
        %v370 = vmul.f32 %v368, %v364
        %v371 = vpack.c.bf16 %v355, %v355
        %v372 = vld [vmem:[%s252] sm:$0xff]
        %v373 = vpack.c.bf16 %v372, %v372
        %v375 = vsel %vm340, %v371, 0
        %vm377 = vcmask 1043456
        %v379 = vsel %vm377, %v373, 0
        %381 = vmatprep.subr.bf16.mxu0 0
        %382 = vmatpush1.bf16.msra.mxu0 0
        %383 = vmatprep.subr.bf16.mxu0 0
        %384 = vmatpush1.bf16.msra.mxu0 0
        %385 = vmatprep.subr.bf16.mxu0 0
        %386 = vmatpush1.bf16.msra.mxu0 0
        %387 = vmatprep.subr.bf16.mxu0 0
        %388 = vmatpush1.bf16.msra.mxu0 0
        %389 = vmatprep.subr.bf16.mxu0 0
        %390 = vmatpush1.bf16.msra.mxu0 0
        %391 = vmatprep.subr.bf16.mxu0 0
        %392 = vmatpush1.bf16.msra.mxu0 0
        %393 = vmatprep.subr.bf16.mxu0 0
        %394 = vmatpush1.bf16.msra.mxu0 0
        %395 = vmatprep.subr.bf16.mxu0 0
        %396 = vmatpush1.bf16.msra.mxu0 %v379
        %397 = vmatprep.subr.bf16.mxu0 0
        %398 = vmatpush2.bf16.msra.mxu0 0
        %399 = vmatprep.subr.bf16.mxu0 0
        %400 = vmatpush2.bf16.msra.mxu0 0
        %401 = vmatprep.subr.bf16.mxu0 0
        %402 = vmatpush2.bf16.msra.mxu0 0
        %403 = vmatprep.subr.bf16.mxu0 0
        %404 = vmatpush2.bf16.msra.mxu0 0
        %405 = vmatprep.subr.bf16.mxu0 0
        %406 = vmatpush2.bf16.msra.mxu0 0
        %407 = vmatprep.subr.bf16.mxu0 0
        %408 = vmatpush2.bf16.msra.mxu0 0
        %409 = vmatprep.subr.bf16.mxu0 0
        %410 = vmatpush2.bf16.msra.mxu0 0
        %411 = vmatprep.subr.bf16.mxu0 0
        %412 = vmatpush2.bf16.msra.mxu0 0
        %413 = vmatprep.mubr.bf16.mxu0 0
        %414 = vmatmul.mubr.bf16.gmra.mxu0 %v375
        %v415 = vpop.f32.mrf.mxu0
        %v416 = vadd.f32 0.0, %v415
        %v417 = vpop.f32.mrf.mxu0
        %v418 = vpop.f32.mrf.mxu0
        %v419 = vpop.f32.mrf.mxu0
        %420 = vdwg.mxu0
        %v421 = vadd.f32 %v370, %v416
        %422 = vst.msk [vmem:[#allocation4] sm:$0xff] %vm282, %v421
        %423 = vst.msk [vmem:[#allocation2] sm:$0xff] %vm362, %v344
      $region40: #{transformer_forward.12} parent=31 // pred_fallthru
        _
      // Predicated region
      $region41: #{transformer_forward.12} parent=31 // pred_check
        %p424 = pneg %p261
      $region42: #{transformer_forward.12} parent=31 // pred_check_branch
        %426 = sbr.rel (%p424) target = $region44
      $region43: #{transformer_forward.12} parent=31 // pred_region
        %v427 = vld [vmem:[#allocation4] sm:$0xff]
        %v428 = vld [vmem:[#allocation3] sm:$0xff]
        %v429 = vrcp.pop %v428
        %431 = vset.pattern.permute.xlu0 0
        %432 = vperm.xlu0 %431, %v429
        %v433 = vpop.permute.xlu0 %432
        %v435 = vmul.f32 %v427, %v433
        %vm436 = vcmask 130048
        %437 = vst.msk [vmem:[%s259] sm:$0xff] %vm436, %v435
      $region44: #{transformer_forward.12} parent=31 // pred_fallthru
        _
      %p438 = scmp.lt.s32.totalorder %s19, 3
      %s439 = scalar_select %p438, %s19, 3
      %p440 = scmp.lt.s32.totalorder %s20, 0
      %s441 = scalar_select %p440, %s20, 0
      %s442 = sadd.s32 %s441, %s439
      %s443 = smul.addr %s442, 8
      %s444 = scalar_lea.vmem %s3, %s443
      // Predicated region
      $region45: #{transformer_forward.12} parent=31 // pred_check
        %p445 = pneg %p137
      $region46: #{transformer_forward.12} parent=31 // pred_check_branch
        %447 = sbr.rel (%p445) target = $region48
      $region47: #{transformer_forward.12} parent=31 // pred_region
        _
      $region48: #{transformer_forward.12} parent=31 // pred_fallthru
        _
    $region32: #{transformer_forward.12} parent=5 // pred_fallthru
      _
    %p448 = scmp.le.s32.totalorder 2, %s9
    // Predicated region
    $region49: #{transformer_forward.12} parent=5 // pred_check
      %p449 = pneg %p448
    $region50: #{transformer_forward.12} parent=5 // pred_check_branch
      %451 = sbr.rel (%p449) target = $region52
    $region51: #{transformer_forward.12} parent=5 // pred_region
      %s452 = ssub.s32 %s9, 2
      // Predicated region
      $region53: #{transformer_forward.12} parent=51 // pred_check
        %p453 = pneg %p143
      $region54: #{transformer_forward.12} parent=51 // pred_check_branch
        %455 = sbr.rel (%p453) target = $region56
      $region55: #{transformer_forward.12} parent=51 // pred_region
        %p456 = scmp.lt.s32.totalorder %s22, 3
        %s457 = scalar_select %p456, %s22, 3
        %p458 = scmp.lt.s32.totalorder %s23, 0
        %s459 = scalar_select %p458, %s23, 0
        %s460 = sadd.s32 %s459, %s457
        %s461 = smul.addr %s460, 8
        %s462 = scalar_lea.vmem %s3, %s461
      $region56: #{transformer_forward.12} parent=51 // pred_fallthru
        _
    $region52: #{transformer_forward.12} parent=5 // pred_fallthru
      _
  $region6: #{transformer_forward.12} parent=0 // loop_footer
    %s13 = sadd.s32 1, %s9
  $region7: #{transformer_forward.12} parent=0 // loop_footer_branch
    %8 = sbr.rel target = $region3
  $region8: #{transformer_forward.12} parent=0 // loop_exit
    _

// kernel: transformer_forward.15
$region0: #{transformer_forward.15}
  #allocation0 [shape = 'u32[]', space=smem, size = 0x4, offset = 0x4, fixed_abs, tag = 'smem constant byte address 0x4 - core index']
  #allocation1 [shape = 'u32[144,128]{1,0:T(1,128)}', space=vmem, size = 0x12000, scoped, tag = 'internal scratch']
  #allocation2 [shape = 'f32[16,32]{1,0:T(8,128)}', space=vmem, size = 0x2000, scoped, tag = 'scratch operand']
  %s0 = inlined_call_operand.vmem [shape: f32[16,128], index: 0, kind: input, shape index: {}]
  %s1 = inlined_call_operand.vmem [shape: f32[128,32], index: 1, kind: input, shape index: {}]
  %s2 = inlined_call_operand.vmem [shape: f32[1,32], index: 2, kind: input, shape index: {}]
  %s3 = inlined_call_operand.vmem [shape: f32[16,32], index: 3, kind: output, shape index: {}]
  %s4 = sld [smem:[#allocation0]]
  $region30: #{transformer_forward.15} parent=0
    _
  %s6 = ssub.s32 1, %s4
  %s7 = scalar_select 0, %s6, %s4
  // Predicated region
  $region2: #{transformer_forward.15} parent=0 // pred_check
    _
  $region3: #{transformer_forward.15} parent=0 // pred_check_branch
    %9 = sbr.rel (0) target = $region5
  $region4: #{transformer_forward.15} parent=0 // pred_region
    _
  $region5: #{transformer_forward.15} parent=0 // pred_fallthru
    _
  // Predicated region
  $region6: #{transformer_forward.15} parent=0 // pred_check
    _
  $region7: #{transformer_forward.15} parent=0 // pred_check_branch
    %11 = sbr.rel (0) target = $region9
  $region8: #{transformer_forward.15} parent=0 // pred_region
    _
  $region9: #{transformer_forward.15} parent=0 // pred_fallthru
    _
  // Predicated region
  $region10: #{transformer_forward.15} parent=0 // pred_check
    _
  $region11: #{transformer_forward.15} parent=0 // pred_check_branch
    %13 = sbr.rel (0) target = $region13
  $region12: #{transformer_forward.15} parent=0 // pred_region
    _
  $region13: #{transformer_forward.15} parent=0 // pred_fallthru
    _
  %p15 = scmp.eq.s32.totalorder 0, 0
  // Predicated region
  $region14: #{transformer_forward.15} parent=0 // pred_check
    %p16 = pneg %p15
  $region15: #{transformer_forward.15} parent=0 // pred_check_branch
    %18 = sbr.rel (%p16) target = $region17
  $region16: #{transformer_forward.15} parent=0 // pred_region
    %vm19 = vcmask 261120
    %20 = vst.msk [vmem:[#allocation2] sm:$0xff] %vm19, 0.0
    %21 = vst.msk [vmem:[#allocation2 + $0x8] sm:$0xff] %vm19, 0.0
  $region17: #{transformer_forward.15} parent=0 // pred_fallthru
    _
  %v22 = vld [vmem:[#allocation2] sm:$0xff]
  %v23 = vld [vmem:[#allocation2 + $0x8] sm:$0xff]
  %v24 = vld [vmem:[%s0] sm:$0xff]
  %v25 = vld [vmem:[%s0 + $0x8] sm:$0xff]
  %v26 = vpack.c.bf16 %v25, %v24
  %v27 = vld [vmem:[%s1] sm:$0xff]
  %v28 = vld [vmem:[%s1 + $0x8] sm:$0xff]
  %v29 = vld [vmem:[%s1 + $0x10] sm:$0xff]
  %v30 = vld [vmem:[%s1 + $0x18] sm:$0xff]
  %v31 = vld [vmem:[%s1 + $0x20] sm:$0xff]
  %v32 = vld [vmem:[%s1 + $0x28] sm:$0xff]
  %v33 = vld [vmem:[%s1 + $0x30] sm:$0xff]
  %v34 = vld [vmem:[%s1 + $0x38] sm:$0xff]
  %v35 = vld [vmem:[%s1 + $0x40] sm:$0xff]
  %v36 = vld [vmem:[%s1 + $0x48] sm:$0xff]
  %v37 = vld [vmem:[%s1 + $0x50] sm:$0xff]
  %v38 = vld [vmem:[%s1 + $0x58] sm:$0xff]
  %v39 = vld [vmem:[%s1 + $0x60] sm:$0xff]
  %v40 = vld [vmem:[%s1 + $0x68] sm:$0xff]
  %v41 = vld [vmem:[%s1 + $0x70] sm:$0xff]
  %v42 = vld [vmem:[%s1 + $0x78] sm:$0xff]
  %v43 = vpack.c.bf16 %v28, %v27
  %v44 = vpack.c.bf16 %v30, %v29
  %v45 = vpack.c.bf16 %v32, %v31
  %v46 = vpack.c.bf16 %v34, %v33
  %v47 = vpack.c.bf16 %v36, %v35
  %v48 = vpack.c.bf16 %v38, %v37
  %v49 = vpack.c.bf16 %v40, %v39
  %v50 = vpack.c.bf16 %v42, %v41
  %51 = vmatprep.subr.bf16.mxu0 0
  %52 = vmatpush1.bf16.msra.mxu0 %v50
  %53 = vmatprep.subr.bf16.mxu0 0
  %54 = vmatpush1.bf16.msra.mxu0 %v49
  %55 = vmatprep.subr.bf16.mxu0 0
  %56 = vmatpush1.bf16.msra.mxu0 %v48
  %57 = vmatprep.subr.bf16.mxu0 0
  %58 = vmatpush1.bf16.msra.mxu0 %v47
  %59 = vmatprep.subr.bf16.mxu0 0
  %60 = vmatpush1.bf16.msra.mxu0 %v46
  %61 = vmatprep.subr.bf16.mxu0 0
  %62 = vmatpush1.bf16.msra.mxu0 %v45
  %63 = vmatprep.subr.bf16.mxu0 0
  %64 = vmatpush1.bf16.msra.mxu0 %v44
  %65 = vmatprep.subr.bf16.mxu0 0
  %66 = vmatpush1.bf16.msra.mxu0 %v43
  %67 = vmatprep.subr.bf16.mxu0 0
  %68 = vmatpush2.bf16.msra.mxu0 0
  %69 = vmatprep.subr.bf16.mxu0 0
  %70 = vmatpush2.bf16.msra.mxu0 0
  %71 = vmatprep.subr.bf16.mxu0 0
  %72 = vmatpush2.bf16.msra.mxu0 0
  %73 = vmatprep.subr.bf16.mxu0 0
  %74 = vmatpush2.bf16.msra.mxu0 0
  %75 = vmatprep.subr.bf16.mxu0 0
  %76 = vmatpush2.bf16.msra.mxu0 0
  %77 = vmatprep.subr.bf16.mxu0 0
  %78 = vmatpush2.bf16.msra.mxu0 0
  %79 = vmatprep.subr.bf16.mxu0 0
  %80 = vmatpush2.bf16.msra.mxu0 0
  %81 = vmatprep.subr.bf16.mxu0 0
  %82 = vmatpush2.bf16.msra.mxu0 0
  %83 = vmatprep.mubr.bf16.mxu0 0
  %84 = vmatmul.mubr.bf16.gmra.mxu0 %v26
  %v85 = vpop.f32.mrf.mxu0
  %v86 = vadd.f32 0.0, %v85
  %v87 = vpop.f32.mrf.mxu0
  %v88 = vpop.f32.mrf.mxu0
  %v89 = vadd.f32 0.0, %v88
  %v90 = vpop.f32.mrf.mxu0
  %91 = vdwg.mxu0
  %v92 = vadd.f32 %v22, %v86
  %v93 = vadd.f32 %v23, %v89
  %vm94 = vcmask 261120
  %95 = vst.msk [vmem:[#allocation2] sm:$0xff] %vm94, %v92
  %96 = vst.msk [vmem:[#allocation2 + $0x8] sm:$0xff] %vm94, %v93
  // Predicated region
  $region18: #{transformer_forward.15} parent=0 // pred_check
    %p97 = pneg %p15
  $region19: #{transformer_forward.15} parent=0 // pred_check_branch
    %99 = sbr.rel (%p97) target = $region21
  $region20: #{transformer_forward.15} parent=0 // pred_region
    %v100 = vld [vmem:[#allocation2] sm:$0xff]
    %v101 = vld [vmem:[#allocation2 + $0x8] sm:$0xff]
    %v102 = vld [vmem:[%s2] sm:$0x1]
    %v104 = vlaneseq
    %v105 = vshrl.u32 %v104, 7
    %v106 = vsub.s32 0, %v105
    %v107 = vrot.slane %v102, %v106
    %v109 = vadd.f32 %v100, %v107
    %v110 = vadd.f32 %v101, %v107
    %111 = vst.msk [vmem:[%s3] sm:$0xff] %vm94, %v109
    %112 = vst.msk [vmem:[%s3 + $0x8] sm:$0xff] %vm94, %v110
  $region21: #{transformer_forward.15} parent=0 // pred_fallthru
    _
  // Predicated region
  $region22: #{transformer_forward.15} parent=0 // pred_check
    _
  $region23: #{transformer_forward.15} parent=0 // pred_check_branch
    %114 = sbr.rel (0) target = $region25
  $region24: #{transformer_forward.15} parent=0 // pred_region
    _
  $region25: #{transformer_forward.15} parent=0 // pred_fallthru
    _
  // Predicated region
  $region26: #{transformer_forward.15} parent=0 // pred_check
    _
  $region27: #{transformer_forward.15} parent=0 // pred_check_branch
    %116 = sbr.rel (0) target = $region29
  $region28: #{transformer_forward.15} parent=0 // pred_region
    _
  $region29: #{transformer_forward.15} parent=0 // pred_fallthru
    _

// kernel: transformer_forward.21
$region0: #{transformer_forward.21}
  #allocation0 [shape = 'u32[]', space=smem, size = 0x4, offset = 0x4, fixed_abs, tag = 'smem constant byte address 0x4 - core index']
  #allocation1 [shape = 'u32[144,128]{1,0:T(1,128)}', space=vmem, size = 0x12000, scoped, tag = 'internal scratch']
  %s0 = inlined_call_operand.vmem [shape: f32[16,32], index: 0, kind: input, shape index: {}]
  %s1 = inlined_call_operand.vmem [shape: f32[1,32], index: 1, kind: input, shape index: {}]
  %s2 = inlined_call_operand.vmem [shape: f32[1,32], index: 2, kind: input, shape index: {}]
  %s3 = inlined_call_operand.vmem [shape: f32[32,64], index: 3, kind: input, shape index: {}]
  %s4 = inlined_call_operand.vmem [shape: f32[1,64], index: 4, kind: input, shape index: {}]
  %s5 = inlined_call_operand.hbm [shape: f32[16,64], index: 5, kind: output, shape index: {}]
  %s6 = sld [smem:[#allocation0]]
  $region30: #{transformer_forward.21} parent=0
    _
  %s8 = ssub.s32 1, %s6
  %s9 = scalar_select 0, %s8, %s6
  $region1: #{transformer_forward.21} parent=0
    #allocation2 [shape = 'u8[8192]{0}', space=vmem, size = 0x2000, scoped, tag = 'output window, operand 0, single buffered']
    #allocation3 [shape = 's32[1]{0}', space=sflag, size = 0x4, scoped, tag = 'scoped memory for transformer_forward.21']
    %10 = vsyncpa [#allocation3], 0
    // Predicated region
    $region2: #{transformer_forward.21} parent=1 // pred_check
      _
    $region3: #{transformer_forward.21} parent=1 // pred_check_branch
      %12 = sbr.rel (0) target = $region5
    $region4: #{transformer_forward.21} parent=1 // pred_region
      _
    $region5: #{transformer_forward.21} parent=1 // pred_fallthru
      _
    // Predicated region
    $region6: #{transformer_forward.21} parent=1 // pred_check
      _
    $region7: #{transformer_forward.21} parent=1 // pred_check_branch
      %14 = sbr.rel (0) target = $region9
    $region8: #{transformer_forward.21} parent=1 // pred_region
      _
    $region9: #{transformer_forward.21} parent=1 // pred_fallthru
      _
    // Predicated region
    $region10: #{transformer_forward.21} parent=1 // pred_check
      _
    $region11: #{transformer_forward.21} parent=1 // pred_check_branch
      %16 = sbr.rel (0) target = $region13
    $region12: #{transformer_forward.21} parent=1 // pred_region
      _
    $region13: #{transformer_forward.21} parent=1 // pred_fallthru
      _
    // Predicated region
    $region14: #{transformer_forward.21} parent=1 // pred_check
      _
    $region15: #{transformer_forward.21} parent=1 // pred_check_branch
      %18 = sbr.rel (0) target = $region17
    $region16: #{transformer_forward.21} parent=1 // pred_region
      _
    $region17: #{transformer_forward.21} parent=1 // pred_fallthru
      _
    // Predicated region
    $region18: #{transformer_forward.21} parent=1 // pred_check
      _
    $region19: #{transformer_forward.21} parent=1 // pred_check_branch
      %20 = sbr.rel (0) target = $region21
    $region20: #{transformer_forward.21} parent=1 // pred_region
      _
    $region21: #{transformer_forward.21} parent=1 // pred_fallthru
      _
    %v22 = vld [vmem:[%s0] sm:$0xff]
    %v23 = vld [vmem:[%s0 + $0x8] sm:$0xff]
    %vm24 = vcmask 261120
    %v25 = vsel %vm24, %v22, -inf
    %26 = vmax.xlane.f32.xlu0 %v25
    %v27 = vpop.xlane.xlu0 %26
    %v28 = vsel %vm24, %v23, -inf
    %29 = vmax.xlane.f32.xlu0 %v28
    %v30 = vpop.xlane.xlu0 %29
    %v31 = vrcp.pop %v27
    %v32 = vmul.f32 %v22, %v31
    %v33 = vrcp.pop %v30
    %v34 = vmul.f32 %v23, %v33
    %v35 = vsel %vm24, %v32, 0.0
    %36 = vadd.xlane.f32.xlu0 %v35
    %v37 = vpop.xlane.xlu0 %36
    %v38 = vsel %vm24, %v34, 0.0
    %39 = vadd.xlane.f32.xlu0 %v38
    %v40 = vpop.xlane.xlu0 %39
    %v41 = vrcp.pop 32.0
    %v42 = vmul.f32 %v37, %v41
    %v43 = vmul.f32 %v40, %v41
    %v44 = vsub.f32 %v32, %v42
    %v45 = vsub.f32 %v34, %v43
    %v46 = vmul.f32 %v44, %v44
    %v47 = vmul.f32 %v45, %v45
    %v48 = vsel %vm24, %v46, 0.0
    %49 = vadd.xlane.f32.xlu0 %v48
    %v50 = vpop.xlane.xlu0 %49
    %v51 = vsel %vm24, %v47, 0.0
    %52 = vadd.xlane.f32.xlu0 %v51
    %v53 = vpop.xlane.xlu0 %52
    %v54 = vmul.f32 %v50, %v41
    %v55 = vmul.f32 %v53, %v41
    %v56 = vadd.f32 %v54, 1e-05
    %v57 = vadd.f32 %v55, 1e-05
    %v58 = vrsqrt.pop %v56
    %v59 = vrsqrt.pop %v57
    %v60 = vmul.f32 %v44, %v58
    %v61 = vmul.f32 %v45, %v59
    %v62 = vld [vmem:[%s1] sm:$0x1]
    %v64 = vlaneseq
    %v65 = vshrl.u32 %v64, 7
    %v66 = vsub.s32 0, %v65
    %v67 = vrot.slane %v62, %v66
    %v69 = vmul.f32 %v60, %v67
    %v70 = vmul.f32 %v61, %v67
    %v71 = vld [vmem:[%s2] sm:$0x1]
    %v73 = vlaneseq
    %v74 = vshrl.u32 %v73, 7
    %v75 = vsub.s32 0, %v74
    %v76 = vrot.slane %v71, %v75
    %v78 = vadd.f32 %v69, %v76
    %v79 = vadd.f32 %v70, %v76
    %v80 = vpack.c.bf16 %v79, %v78
    %v81 = vld [vmem:[%s3] sm:$0xff]
    %v82 = vld [vmem:[%s3 + $0x8] sm:$0xff]
    %v83 = vld [vmem:[%s3 + $0x10] sm:$0xff]
    %v84 = vld [vmem:[%s3 + $0x18] sm:$0xff]
    %v85 = vpack.c.bf16 %v82, %v81
    %v86 = vpack.c.bf16 %v84, %v83
    %v87 = vld [vmem:[%s4] sm:$0x1]
    %v89 = vlaneseq
    %v90 = vshrl.u32 %v89, 7
    %v91 = vsub.s32 0, %v90
    %v92 = vrot.slane %v87, %v91
    %v95 = vsel %vm24, %v80, 0
    %97 = vmatprep.subr.bf16.mxu0 0
    %98 = vmatpush1.bf16.msra.mxu0 0
    %99 = vmatprep.subr.bf16.mxu0 0
    %100 = vmatpush1.bf16.msra.mxu0 0
    %101 = vmatprep.subr.bf16.mxu0 0
    %102 = vmatpush1.bf16.msra.mxu0 0
    %103 = vmatprep.subr.bf16.mxu0 0
    %104 = vmatpush1.bf16.msra.mxu0 0
    %105 = vmatprep.subr.bf16.mxu0 0
    %106 = vmatpush1.bf16.msra.mxu0 0
    %107 = vmatprep.subr.bf16.mxu0 0
    %108 = vmatpush1.bf16.msra.mxu0 0
    %109 = vmatprep.subr.bf16.mxu0 0
    %110 = vmatpush1.bf16.msra.mxu0 %v86
    %111 = vmatprep.subr.bf16.mxu0 0
    %112 = vmatpush1.bf16.msra.mxu0 %v85
    %113 = vmatprep.subr.bf16.mxu0 0
    %114 = vmatpush2.bf16.msra.mxu0 0
    %115 = vmatprep.subr.bf16.mxu0 0
    %116 = vmatpush2.bf16.msra.mxu0 0
    %117 = vmatprep.subr.bf16.mxu0 0
    %118 = vmatpush2.bf16.msra.mxu0 0
    %119 = vmatprep.subr.bf16.mxu0 0
    %120 = vmatpush2.bf16.msra.mxu0 0
    %121 = vmatprep.subr.bf16.mxu0 0
    %122 = vmatpush2.bf16.msra.mxu0 0
    %123 = vmatprep.subr.bf16.mxu0 0
    %124 = vmatpush2.bf16.msra.mxu0 0
    %125 = vmatprep.subr.bf16.mxu0 0
    %126 = vmatpush2.bf16.msra.mxu0 0
    %127 = vmatprep.subr.bf16.mxu0 0
    %128 = vmatpush2.bf16.msra.mxu0 0
    %129 = vmatprep.mubr.bf16.mxu0 0
    %130 = vmatmul.mubr.bf16.gmra.mxu0 %v95
    %v131 = vpop.f32.mrf.mxu0
    %v132 = vadd.f32 %v92, %v131
    %v133 = vpop.f32.mrf.mxu0
    %v134 = vpop.f32.mrf.mxu0
    %v135 = vadd.f32 %v92, %v134
    %v136 = vpop.f32.mrf.mxu0
    %137 = vdwg.mxu0
    %vm138 = vcmask 523264
    %139 = vst.msk [vmem:[#allocation2] sm:$0xff] %vm138, %v132
    %140 = vst.msk [vmem:[#allocation2 + $0x8] sm:$0xff] %vm138, %v135
    // Predicated region
    $region22: #{transformer_forward.21} parent=1 // pred_check
      _
    $region23: #{transformer_forward.21} parent=1 // pred_check_branch
      %142 = sbr.rel (0) target = $region25
    $region24: #{transformer_forward.21} parent=1 // pred_region
      %s144 = ssub.s32 256, 256
      %145 = vsyncadd [#allocation3], %s144
      %s146 = sshll.u32 [#allocation2], 4
      %s147 = int_to_ptr.vmem [resolvable:$true] %s146
      %152 = dma.vmem_to_hbm [thread:$0]  %s147, 256, %s5, [#allocation3], 128, 128, 8
    $region25: #{transformer_forward.21} parent=1 // pred_fallthru
      _
    // Predicated region
    $region26: #{transformer_forward.21} parent=1 // pred_check
      _
    $region27: #{transformer_forward.21} parent=1 // pred_check_branch
      %154 = sbr.rel (0) target = $region29
    $region28: #{transformer_forward.21} parent=1 // pred_region
      %155 = dma.done [#allocation3], 256
    $region29: #{transformer_forward.21} parent=1 // pred_fallthru
      _
    %156 = vsyncpa [#allocation3], 1

</llo_original>
